<compile_context>
chip_gen: v7x
topology: tpu7x:2x2x1
jax: 0.10.0
libtpu: 0.0.40
codegen_flags: <defaults>
</compile_context>

<pallas_src>
import math

import jax
import jax.numpy as jnp
import numpy as np
from jax import lax
from jax.experimental import pallas as pl
from jax.experimental.pallas import tpu as pltpu


# ---------------------------------------------------------------------------
# Kernel 1: per-timestep TopK scorer (embarrassingly parallel over T).
# ---------------------------------------------------------------------------
def _topk_kernel(z_ref, mask_ref, scorer_ref, ztopk_ref):
    Z = z_ref[0]                 # (N, F) f32
    m = mask_ref[0]              # (N, 1) f32
    sc = scorer_ref[...]         # (1, F) f32   pre-scaled by 1/||scorer||

    N = Z.shape[0]
    K = ztopk_ref.shape[2]

    # Exact f32 scores on the VPU/XLU: avoids MXU bf16 rounding (which could flip
    # near-tied top-k picks) and avoids a transposed-operand contraction over Z.
    scores = jnp.sum(Z * sc, axis=1, keepdims=True) + m               # (N, 1)

    # Iterative top-k (K small & static): record argmax index + tanh(max) weight.
    iota_col = lax.broadcasted_iota(jnp.int32, (N, 1), 0)
    k_iota = lax.broadcasted_iota(jnp.int32, (K, 1), 0)
    idx_vec = jnp.zeros((K, 1), jnp.int32)
    w_vec = jnp.zeros((K, 1), jnp.float32)
    s = scores
    for j in range(K):
        mval = jnp.max(s)
        idx = jnp.min(jnp.where(s == mval, iota_col, N))
        idx_vec = jnp.where(k_iota == j, idx, idx_vec)
        w_vec = jnp.where(k_iota == j, jnp.tanh(mval), w_vec)
        s = jnp.where(iota_col == idx, -jnp.inf, s)
    # TODO(synk): torch pads with the last valid index (u.pad_with_last_val) when
    # fewer than k finite scores exist, and NaN scores would never match the
    # argmax equality; those paths are not exercised here.

    # Weighted one-hot selection matrix built in one broadcast compare: (K, N).
    iota_row = lax.broadcasted_iota(jnp.int32, (1, N), 1)
    sel_w = jnp.where(idx_vec == iota_row, w_vec, 0.0)                 # (K, N)

    # Canonical MXU gather (K,N)@(N,F) -> (K,F); transpose only the tiny result.
    ztopk_kf = jnp.dot(sel_w, Z, preferred_element_type=jnp.float32)  # (K, F)
    ztopk_ref[0] = ztopk_kf.T                                         # (F, K)


# ---------------------------------------------------------------------------
# Kernel 2: sequential mat-GRU evolution of the GCN weights.
#   T timesteps are processed inside one fori_loop per grid step (chunked so the
#   z_topk / W_seq chunks fit VMEM); the evolving Q lives in VMEM scratch.
# ---------------------------------------------------------------------------
def _gru_kernel(z_ref, wu_ref, uh_ref, b_ref, q0_ref, w_out_ref, q_scr):
    @pl.when(pl.program_id(0) == 0)
    def _():
        q_scr[...] = q0_ref[...]

    WU = wu_ref[...]             # (3F, 2F)  [Wu Uu; Wr Ur; Wh 0]
    Uh = uh_ref[...]             # (F, F)
    B = b_ref[...]               # (3F, K)   [bu; br; bh]
    F_ = Uh.shape[0]
    Tc = z_ref.shape[0]

    def step(i, Q):
        x = z_ref[i]                                                  # (F, K)
        xq = jnp.concatenate([x, Q], axis=0)                          # (2F, K)
        g = jnp.dot(WU, xq, preferred_element_type=jnp.float32) + B   # (3F, K)
        upd = jax.nn.sigmoid(g[:F_])
        rst = jax.nn.sigmoid(g[F_:2 * F_])
        hcap = jnp.tanh(g[2 * F_:]
                        + jnp.dot(Uh, rst * Q,
                                  preferred_element_type=jnp.float32))
        new_Q = (1.0 - upd) * Q + upd * hcap
        w_out_ref[i] = new_Q
        return new_Q

    q_scr[...] = lax.fori_loop(0, Tc, step, q_scr[...])


# ---------------------------------------------------------------------------
# Kernel 3: ZW_t = Z_t @ W_t, hoisted out of the adjacency row-tile loop.
# ---------------------------------------------------------------------------
def _zw_kernel(z_ref, w_ref, zw_ref):
    zw = jnp.dot(z_ref[0], w_ref[0], preferred_element_type=jnp.float32)
    zw_ref[0] = zw.astype(jnp.bfloat16)


# ---------------------------------------------------------------------------
# Kernel 4: GCN layer ReLU(A_t @ ZW_t); bf16 operands into the MXU, f32 acc.
# ---------------------------------------------------------------------------
def _gcn_kernel(adj_ref, zw_ref, out_ref):
    acc = jnp.dot(adj_ref[0], zw_ref[0], preferred_element_type=jnp.float32)
    out_ref[0] = jnp.maximum(acc, 0.0)


# ---------------------------------------------------------------------------
# Tiling / VMEM helpers
# ---------------------------------------------------------------------------
def _vmem_capacity_bytes():
    try:
        return int(pltpu.get_tpu_info().vmem_capacity_bytes)
    except Exception:
        return 64 * 1024 * 1024          # conservative fallback (v7x per-core VMEM)


def _pick_row_tile(n, per_row_bytes, fixed_bytes, budget):
    """Largest row tile (multiple of 8 dividing n, or n itself) fitting budget."""
    if n * per_row_bytes + fixed_bytes <= budget:
        return n
    for t in (4096, 2048, 1024, 512, 256, 128, 64, 32, 16, 8):
        if t < n and n % t == 0 and t * per_row_bytes + fixed_bytes <= budget:
            return t
    return n


def _pick_t_chunk(T, F, K, budget):
    per_t = F * K * 4 * 2 * 2            # z_topk + W_seq blocks, f32, double-buffered
    max_chunk = max(1, budget // per_t)
    if T <= max_chunk:
        return T
    for c in range(int(max_chunk), 0, -1):
        if T % c == 0:
            return c
    return 1


# ---------------------------------------------------------------------------
# Wrapper
# ---------------------------------------------------------------------------
def _grcu_forward_impl(adj, embs, mask, params):
    T, N, F = embs.shape
    K = params["gcn_init"].shape[1]

    vmem_cap = _vmem_capacity_bytes()
    budget = min(int(vmem_cap * 0.6), 96 * 1024 * 1024)
    vmem_limit = max(32 * 1024 * 1024, min(int(vmem_cap * 0.9), 110 * 1024 * 1024))

    # --- one-time wrapper prep (off the per-timestep critical path) ---
    scorer = params["scorer"]                                            # (F, 1)
    scorer_row = (scorer / jnp.sqrt(jnp.sum(scorer * scorer))).reshape(1, F)
    adj_bf16 = adj.astype(jnp.bfloat16)           # halve the dominant HBM stream
    zff = jnp.zeros((F, F), jnp.float32)
    wu_stack = jnp.concatenate([                                         # (3F, 2F)
        jnp.concatenate([params["wu"], params["uu"]], axis=1),
        jnp.concatenate([params["wr"], params["ur"]], axis=1),
        jnp.concatenate([params["wh"], zff], axis=1)], axis=0)
    b_stack = jnp.concatenate([params["bu"], params["br"], params["bh"]], axis=0)

    # --- stage 1: TopK scorer, T-parallel ---
    # NOTE: whole (N,F) block per timestep; for very large graphs a two-level
    # chunked top-k would be needed to bound VMEM.
    z_topk_seq = pl.pallas_call(
        _topk_kernel,
        out_shape=jax.ShapeDtypeStruct((T, F, K), jnp.float32),
        grid_spec=pltpu.PrefetchScalarGridSpec(
            num_scalar_prefetch=0,
            grid=(T,),
            in_specs=[
                pl.BlockSpec((1, N, F), lambda t: (t, 0, 0)),
                pl.BlockSpec((1, N, 1), lambda t: (t, 0, 0)),
                pl.BlockSpec((1, F), lambda t: (0, 0)),
            ],
            out_specs=pl.BlockSpec((1, F, K), lambda t: (t, 0, 0)),
        ),
        compiler_params=pltpu.CompilerParams(
            dimension_semantics=("parallel",),
            vmem_limit_bytes=vmem_limit),
    )(embs, mask, scorer_row)

    # --- stage 2: sequential GRU weight evolution (fori_loop over T inside) ---
    t_chunk = _pick_t_chunk(T, F, K, budget)
    w_seq = pl.pallas_call(
        _gru_kernel,
        out_shape=jax.ShapeDtypeStruct((T, F, K), jnp.float32),
        grid_spec=pltpu.PrefetchScalarGridSpec(
            num_scalar_prefetch=0,
            grid=(T // t_chunk,),
            in_specs=[
                pl.BlockSpec((t_chunk, F, K), lambda c: (c, 0, 0)),
                pl.BlockSpec((3 * F, 2 * F), lambda c: (0, 0)),
                pl.BlockSpec((F, F), lambda c: (0, 0)),
                pl.BlockSpec((3 * F, K), lambda c: (0, 0)),
                pl.BlockSpec((F, K), lambda c: (0, 0)),
            ],
            out_specs=pl.BlockSpec((t_chunk, F, K), lambda c: (c, 0, 0)),
            scratch_shapes=[pltpu.VMEM((F, K), jnp.float32)],
        ),
        compiler_params=pltpu.CompilerParams(
            dimension_semantics=("arbitrary",),   # serial: Q carried in scratch
            vmem_limit_bytes=vmem_limit),
    )(z_topk_seq, wu_stack, params["uh"], b_stack, params["gcn_init"])

    # --- stage 3: ZW = Z @ W_t (hoisted out of the row-tile loop), bf16 out ---
    zw_per_row = F * 4 * 2 + K * 2 * 2
    zw_fixed = F * K * 4 * 2
    zw_tile = _pick_row_tile(N, zw_per_row, zw_fixed, budget)
    zw_seq = pl.pallas_call(
        _zw_kernel,
        out_shape=jax.ShapeDtypeStruct((T, N, K), jnp.bfloat16),
        grid_spec=pltpu.PrefetchScalarGridSpec(
            num_scalar_prefetch=0,
            grid=(T, N // zw_tile),
            in_specs=[
                pl.BlockSpec((1, zw_tile, F), lambda t, r: (t, r, 0)),
                pl.BlockSpec((1, F, K), lambda t, r: (t, 0, 0)),
            ],
            out_specs=pl.BlockSpec((1, zw_tile, K), lambda t, r: (t, r, 0)),
        ),
        compiler_params=pltpu.CompilerParams(
            dimension_semantics=("parallel", "parallel"),
            vmem_limit_bytes=vmem_limit),
    )(embs, w_seq)

    # --- stage 4: ReLU(A @ ZW), bf16 into the MXU, direct (T, N, K) output ---
    gcn_per_row = N * 2 * 2 + K * 4 * 2
    gcn_fixed = N * K * 2 * 2
    gcn_tile = _pick_row_tile(N, gcn_per_row, gcn_fixed, budget)
    out = pl.pallas_call(
        _gcn_kernel,
        out_shape=jax.ShapeDtypeStruct((T, N, K), jnp.float32),
        grid_spec=pltpu.PrefetchScalarGridSpec(
            num_scalar_prefetch=0,
            grid=(T, N // gcn_tile),
            in_specs=[
                pl.BlockSpec((1, gcn_tile, N), lambda t, r: (t, r, 0)),
                pl.BlockSpec((1, N, K), lambda t, r: (t, 0, 0)),
            ],
            out_specs=pl.BlockSpec((1, gcn_tile, K), lambda t, r: (t, r, 0)),
        ),
        compiler_params=pltpu.CompilerParams(
            dimension_semantics=("parallel", "parallel"),
            vmem_limit_bytes=vmem_limit),
    )(adj_bf16, zw_seq)

    return out                                                        # (T, N, K)


grcu_forward = jax.jit(_grcu_forward_impl)


# ---------------------------------------------------------------------------
# Pure-JAX reference mirroring the PyTorch forward (full f32, HIGHEST precision).
# ---------------------------------------------------------------------------
def grcu_reference(adj, embs, mask, p):
    hi = lax.Precision.HIGHEST
    Q = p["gcn_init"]
    scorer = p["scorer"]
    norm = jnp.sqrt(jnp.sum(scorer * scorer))
    outs = []
    for t in range(adj.shape[0]):
        A, Z, m = adj[t], embs[t], mask[t]
        scores = jnp.dot(Z, scorer, precision=hi) / norm + m          # (N,1)
        vals, idx = lax.top_k(scores[:, 0], Q.shape[1])
        z_topk = (Z[idx] * jnp.tanh(vals)[:, None]).T                 # (F,K)
        upd = jax.nn.sigmoid(jnp.dot(p["wu"], z_topk, precision=hi)
                             + jnp.dot(p["uu"], Q, precision=hi) + p["bu"])
        rst = jax.nn.sigmoid(jnp.dot(p["wr"], z_topk, precision=hi)
                             + jnp.dot(p["ur"], Q, precision=hi) + p["br"])
        hcap = jnp.tanh(jnp.dot(p["wh"], z_topk, precision=hi)
                        + jnp.dot(p["uh"], rst * Q, precision=hi) + p["bh"])
        Q = (1.0 - upd) * Q + upd * hcap
        outs.append(jnp.maximum(jnp.dot(A, jnp.dot(Z, Q, precision=hi),
                                        precision=hi), 0.0))
    return jnp.stack(outs)


def init_params(key, in_feats, out_feats):
    F, K = in_feats, out_feats
    ks = jax.random.split(key, 8)

    def unif(k, shape, fan):
        stdv = 1.0 / math.sqrt(fan)
        return jax.random.uniform(k, shape, jnp.float32, -stdv, stdv)

    return {
        "scorer": unif(ks[0], (F, 1), F),        # TopK.reset_param uses size(0)
        "wu": unif(ks[1], (F, F), F), "uu": unif(ks[2], (F, F), F),
        "bu": jnp.zeros((F, K), jnp.float32),
        "wr": unif(ks[3], (F, F), F), "ur": unif(ks[4], (F, F), F),
        "br": jnp.zeros((F, K), jnp.float32),
        "wh": unif(ks[5], (F, F), F), "uh": unif(ks[6], (F, F), F),
        "bh": jnp.zeros((F, K), jnp.float32),
        "gcn_init": unif(ks[7], (F, K), K),      # reset_param uses size(1)
    }


if __name__ == "__main__":
    T, N, F, K = 4, 32, 16, 8   # timesteps, nodes, in_feats, out_feats

    key = jax.random.PRNGKey(0)
    kp, ka, ke = jax.random.split(key, 3)

    params = init_params(kp, F, K)
    adj = jax.random.uniform(ka, (T, N, N), jnp.float32)   # synthetic A_hat
    embs = jax.random.normal(ke, (T, N, F), jnp.float32)
    mask = jnp.zeros((T, N, 1), jnp.float32)                # all nodes selectable

    out = jax.block_until_ready(grcu_forward(adj, embs, mask, params))
    ref = jax.block_until_ready(grcu_reference(adj, embs, mask, params))

    # Tolerance covers the bf16 adj + bf16 ZW streams feeding the final GCN matmul;
    # scorer / top-k selection stays exact f32, GRU chain is bf16-pass MXU.
    np.testing.assert_allclose(np.asarray(out), np.asarray(ref),
                               rtol=2e-2, atol=5e-2)
    print("KERNEL_OK")
</pallas_src>

<mosaic_0001>
module attributes {stable_mosaic.version = 11 : i64} {
  func.func @_topk_kernel(%arg0: i32, %arg1: memref<1x32x16xf32, #tpu.memory_space<vmem>>, %arg2: memref<1x32x1xf32, #tpu.memory_space<vmem>>, %arg3: memref<1x16xf32, #tpu.memory_space<vmem>>, %arg4: memref<1x16x8xf32, #tpu.memory_space<vmem>>) attributes {dimension_semantics = [#tpu.dimension_semantics<parallel>], iteration_bounds = array<i64: 4>, scalar_prefetch = 0 : i64, scratch_operands = 0 : i64, tpu.core_type = #tpu.core_type<tc>, window_params = [{transform_indices = @transform_0, window_bounds = array<i64: 1, 32, 16>}, {transform_indices = @transform_1, window_bounds = array<i64: 1, 32, 1>}, {pipeline_mode = #tpu.pipeline_mode<synchronous>, transform_indices = @transform_2, window_bounds = array<i64: 1, 16>}, {transform_indices = @transform_3, window_bounds = array<i64: 1, 16, 8>}]} {
    %c0 = arith.constant 0 : index
    %c0_0 = arith.constant 0 : index
    %c0_1 = arith.constant 0 : index
    %0 = vector.load %arg1[%c0, %c0_0, %c0_1] : memref<1x32x16xf32, #tpu.memory_space<vmem>>, vector<1x32x16xf32>
    %1 = vector.shape_cast %0 : vector<1x32x16xf32> to vector<32x16xf32>
    %c0_2 = arith.constant 0 : index
    %c0_3 = arith.constant 0 : index
    %c0_4 = arith.constant 0 : index
    %2 = vector.load %arg2[%c0_2, %c0_3, %c0_4] : memref<1x32x1xf32, #tpu.memory_space<vmem>>, vector<1x32x1xf32>
    %3 = vector.shape_cast %2 : vector<1x32x1xf32> to vector<32x1xf32>
    %c0_5 = arith.constant 0 : index
    %c0_6 = arith.constant 0 : index
    %4 = vector.load %arg3[%c0_5, %c0_6] : memref<1x16xf32, #tpu.memory_space<vmem>>, vector<1x16xf32>
    %5 = vector.broadcast %4 : vector<1x16xf32> to vector<32x16xf32>
    %6 = arith.mulf %1, %5 : vector<32x16xf32>
    %cst = arith.constant dense<0.000000e+00> : vector<32xf32>
    %7 = vector.multi_reduction <add>, %6, %cst [1] : vector<32x16xf32> to vector<32xf32>
    %8 = vector.shape_cast %7 : vector<32xf32> to vector<32x1xf32>
    %9 = arith.addf %8, %3 : vector<32x1xf32>
    %10 = tpu.iota {dimensions = array<i32: 0>} : vector<32x1xi32>
    %11 = tpu.iota {dimensions = array<i32: 0>} : vector<8x1xi32>
    %c0_i32 = arith.constant 0 : i32
    %12 = vector.broadcast %c0_i32 : i32 to vector<8x1xi32>
    %cst_7 = arith.constant 0.000000e+00 : f32
    %13 = vector.broadcast %cst_7 : f32 to vector<8x1xf32>
    %14 = vector.shape_cast %9 : vector<32x1xf32> to vector<1x32x1xf32>
    %cst_8 = arith.constant dense<0xFF800000> : vector<1xf32>
    %15 = vector.multi_reduction <maximumf>, %14, %cst_8 [1, 2] : vector<1x32x1xf32> to vector<1xf32>
    %16 = vector.shape_cast %15 : vector<1xf32> to vector<1x1x1xf32>
    %17 = vector.extract %16[0, 0, 0] : f32 from vector<1x1x1xf32>
    %18 = vector.broadcast %17 : f32 to vector<32x1xf32>
    %19 = arith.cmpf oeq, %9, %18 : vector<32x1xf32>
    %c32_i32 = arith.constant 32 : i32
    %20 = vector.broadcast %c32_i32 : i32 to vector<32x1xi32>
    %21 = arith.select %19, %10, %20 : vector<32x1xi1>, vector<32x1xi32>
    %22 = vector.shape_cast %21 : vector<32x1xi32> to vector<1x32x1xi32>
    %cst_9 = arith.constant dense<2147483647> : vector<1xi32>
    %23 = vector.multi_reduction <minsi>, %22, %cst_9 [1, 2] : vector<1x32x1xi32> to vector<1xi32>
    %24 = vector.shape_cast %23 : vector<1xi32> to vector<1x1x1xi32>
    %25 = vector.extract %24[0, 0, 0] : i32 from vector<1x1x1xi32>
    %c0_i32_10 = arith.constant 0 : i32
    %26 = vector.broadcast %c0_i32_10 : i32 to vector<8x1xi32>
    %27 = arith.cmpi eq, %11, %26 : vector<8x1xi32>
    %28 = vector.broadcast %25 : i32 to vector<8x1xi32>
    %29 = arith.select %27, %28, %12 : vector<8x1xi1>, vector<8x1xi32>
    %c0_i32_11 = arith.constant 0 : i32
    %30 = vector.broadcast %c0_i32_11 : i32 to vector<8x1xi32>
    %31 = arith.cmpi eq, %11, %30 : vector<8x1xi32>
    %32 = math.tanh %17 : f32
    %33 = vector.broadcast %32 : f32 to vector<8x1xf32>
    %34 = arith.select %31, %33, %13 : vector<8x1xi1>, vector<8x1xf32>
    %35 = vector.broadcast %25 : i32 to vector<32x1xi32>
    %36 = arith.cmpi eq, %10, %35 : vector<32x1xi32>
    %cst_12 = arith.constant 0xFF800000 : f32
    %37 = vector.broadcast %cst_12 : f32 to vector<32x1xf32>
    %38 = arith.select %36, %37, %9 : vector<32x1xi1>, vector<32x1xf32>
    %39 = vector.shape_cast %38 : vector<32x1xf32> to vector<1x32x1xf32>
    %cst_13 = arith.constant dense<0xFF800000> : vector<1xf32>
    %40 = vector.multi_reduction <maximumf>, %39, %cst_13 [1, 2] : vector<1x32x1xf32> to vector<1xf32>
    %41 = vector.shape_cast %40 : vector<1xf32> to vector<1x1x1xf32>
    %42 = vector.extract %41[0, 0, 0] : f32 from vector<1x1x1xf32>
    %43 = vector.broadcast %42 : f32 to vector<32x1xf32>
    %44 = arith.cmpf oeq, %38, %43 : vector<32x1xf32>
    %c32_i32_14 = arith.constant 32 : i32
    %45 = vector.broadcast %c32_i32_14 : i32 to vector<32x1xi32>
    %46 = arith.select %44, %10, %45 : vector<32x1xi1>, vector<32x1xi32>
    %47 = vector.shape_cast %46 : vector<32x1xi32> to vector<1x32x1xi32>
    %cst_15 = arith.constant dense<2147483647> : vector<1xi32>
    %48 = vector.multi_reduction <minsi>, %47, %cst_15 [1, 2] : vector<1x32x1xi32> to vector<1xi32>
    %49 = vector.shape_cast %48 : vector<1xi32> to vector<1x1x1xi32>
    %50 = vector.extract %49[0, 0, 0] : i32 from vector<1x1x1xi32>
    %c1_i32 = arith.constant 1 : i32
    %51 = vector.broadcast %c1_i32 : i32 to vector<8x1xi32>
    %52 = arith.cmpi eq, %11, %51 : vector<8x1xi32>
    %53 = vector.broadcast %50 : i32 to vector<8x1xi32>
    %54 = arith.select %52, %53, %29 : vector<8x1xi1>, vector<8x1xi32>
    %c1_i32_16 = arith.constant 1 : i32
    %55 = vector.broadcast %c1_i32_16 : i32 to vector<8x1xi32>
    %56 = arith.cmpi eq, %11, %55 : vector<8x1xi32>
    %57 = math.tanh %42 : f32
    %58 = vector.broadcast %57 : f32 to vector<8x1xf32>
    %59 = arith.select %56, %58, %34 : vector<8x1xi1>, vector<8x1xf32>
    %60 = vector.broadcast %50 : i32 to vector<32x1xi32>
    %61 = arith.cmpi eq, %10, %60 : vector<32x1xi32>
    %cst_17 = arith.constant 0xFF800000 : f32
    %62 = vector.broadcast %cst_17 : f32 to vector<32x1xf32>
    %63 = arith.select %61, %62, %38 : vector<32x1xi1>, vector<32x1xf32>
    %64 = vector.shape_cast %63 : vector<32x1xf32> to vector<1x32x1xf32>
    %cst_18 = arith.constant dense<0xFF800000> : vector<1xf32>
    %65 = vector.multi_reduction <maximumf>, %64, %cst_18 [1, 2] : vector<1x32x1xf32> to vector<1xf32>
    %66 = vector.shape_cast %65 : vector<1xf32> to vector<1x1x1xf32>
    %67 = vector.extract %66[0, 0, 0] : f32 from vector<1x1x1xf32>
    %68 = vector.broadcast %67 : f32 to vector<32x1xf32>
    %69 = arith.cmpf oeq, %63, %68 : vector<32x1xf32>
    %c32_i32_19 = arith.constant 32 : i32
    %70 = vector.broadcast %c32_i32_19 : i32 to vector<32x1xi32>
    %71 = arith.select %69, %10, %70 : vector<32x1xi1>, vector<32x1xi32>
    %72 = vector.shape_cast %71 : vector<32x1xi32> to vector<1x32x1xi32>
    %cst_20 = arith.constant dense<2147483647> : vector<1xi32>
    %73 = vector.multi_reduction <minsi>, %72, %cst_20 [1, 2] : vector<1x32x1xi32> to vector<1xi32>
    %74 = vector.shape_cast %73 : vector<1xi32> to vector<1x1x1xi32>
    %75 = vector.extract %74[0, 0, 0] : i32 from vector<1x1x1xi32>
    %c2_i32 = arith.constant 2 : i32
    %76 = vector.broadcast %c2_i32 : i32 to vector<8x1xi32>
    %77 = arith.cmpi eq, %11, %76 : vector<8x1xi32>
    %78 = vector.broadcast %75 : i32 to vector<8x1xi32>
    %79 = arith.select %77, %78, %54 : vector<8x1xi1>, vector<8x1xi32>
    %c2_i32_21 = arith.constant 2 : i32
    %80 = vector.broadcast %c2_i32_21 : i32 to vector<8x1xi32>
    %81 = arith.cmpi eq, %11, %80 : vector<8x1xi32>
    %82 = math.tanh %67 : f32
    %83 = vector.broadcast %82 : f32 to vector<8x1xf32>
    %84 = arith.select %81, %83, %59 : vector<8x1xi1>, vector<8x1xf32>
    %85 = vector.broadcast %75 : i32 to vector<32x1xi32>
    %86 = arith.cmpi eq, %10, %85 : vector<32x1xi32>
    %cst_22 = arith.constant 0xFF800000 : f32
    %87 = vector.broadcast %cst_22 : f32 to vector<32x1xf32>
    %88 = arith.select %86, %87, %63 : vector<32x1xi1>, vector<32x1xf32>
    %89 = vector.shape_cast %88 : vector<32x1xf32> to vector<1x32x1xf32>
    %cst_23 = arith.constant dense<0xFF800000> : vector<1xf32>
    %90 = vector.multi_reduction <maximumf>, %89, %cst_23 [1, 2] : vector<1x32x1xf32> to vector<1xf32>
    %91 = vector.shape_cast %90 : vector<1xf32> to vector<1x1x1xf32>
    %92 = vector.extract %91[0, 0, 0] : f32 from vector<1x1x1xf32>
    %93 = vector.broadcast %92 : f32 to vector<32x1xf32>
    %94 = arith.cmpf oeq, %88, %93 : vector<32x1xf32>
    %c32_i32_24 = arith.constant 32 : i32
    %95 = vector.broadcast %c32_i32_24 : i32 to vector<32x1xi32>
    %96 = arith.select %94, %10, %95 : vector<32x1xi1>, vector<32x1xi32>
    %97 = vector.shape_cast %96 : vector<32x1xi32> to vector<1x32x1xi32>
    %cst_25 = arith.constant dense<2147483647> : vector<1xi32>
    %98 = vector.multi_reduction <minsi>, %97, %cst_25 [1, 2] : vector<1x32x1xi32> to vector<1xi32>
    %99 = vector.shape_cast %98 : vector<1xi32> to vector<1x1x1xi32>
    %100 = vector.extract %99[0, 0, 0] : i32 from vector<1x1x1xi32>
    %c3_i32 = arith.constant 3 : i32
    %101 = vector.broadcast %c3_i32 : i32 to vector<8x1xi32>
    %102 = arith.cmpi eq, %11, %101 : vector<8x1xi32>
    %103 = vector.broadcast %100 : i32 to vector<8x1xi32>
    %104 = arith.select %102, %103, %79 : vector<8x1xi1>, vector<8x1xi32>
    %c3_i32_26 = arith.constant 3 : i32
    %105 = vector.broadcast %c3_i32_26 : i32 to vector<8x1xi32>
    %106 = arith.cmpi eq, %11, %105 : vector<8x1xi32>
    %107 = math.tanh %92 : f32
    %108 = vector.broadcast %107 : f32 to vector<8x1xf32>
    %109 = arith.select %106, %108, %84 : vector<8x1xi1>, vector<8x1xf32>
    %110 = vector.broadcast %100 : i32 to vector<32x1xi32>
    %111 = arith.cmpi eq, %10, %110 : vector<32x1xi32>
    %cst_27 = arith.constant 0xFF800000 : f32
    %112 = vector.broadcast %cst_27 : f32 to vector<32x1xf32>
    %113 = arith.select %111, %112, %88 : vector<32x1xi1>, vector<32x1xf32>
    %114 = vector.shape_cast %113 : vector<32x1xf32> to vector<1x32x1xf32>
    %cst_28 = arith.constant dense<0xFF800000> : vector<1xf32>
    %115 = vector.multi_reduction <maximumf>, %114, %cst_28 [1, 2] : vector<1x32x1xf32> to vector<1xf32>
    %116 = vector.shape_cast %115 : vector<1xf32> to vector<1x1x1xf32>
    %117 = vector.extract %116[0, 0, 0] : f32 from vector<1x1x1xf32>
    %118 = vector.broadcast %117 : f32 to vector<32x1xf32>
    %119 = arith.cmpf oeq, %113, %118 : vector<32x1xf32>
    %c32_i32_29 = arith.constant 32 : i32
    %120 = vector.broadcast %c32_i32_29 : i32 to vector<32x1xi32>
    %121 = arith.select %119, %10, %120 : vector<32x1xi1>, vector<32x1xi32>
    %122 = vector.shape_cast %121 : vector<32x1xi32> to vector<1x32x1xi32>
    %cst_30 = arith.constant dense<2147483647> : vector<1xi32>
    %123 = vector.multi_reduction <minsi>, %122, %cst_30 [1, 2] : vector<1x32x1xi32> to vector<1xi32>
    %124 = vector.shape_cast %123 : vector<1xi32> to vector<1x1x1xi32>
    %125 = vector.extract %124[0, 0, 0] : i32 from vector<1x1x1xi32>
    %c4_i32 = arith.constant 4 : i32
    %126 = vector.broadcast %c4_i32 : i32 to vector<8x1xi32>
    %127 = arith.cmpi eq, %11, %126 : vector<8x1xi32>
    %128 = vector.broadcast %125 : i32 to vector<8x1xi32>
    %129 = arith.select %127, %128, %104 : vector<8x1xi1>, vector<8x1xi32>
    %c4_i32_31 = arith.constant 4 : i32
    %130 = vector.broadcast %c4_i32_31 : i32 to vector<8x1xi32>
    %131 = arith.cmpi eq, %11, %130 : vector<8x1xi32>
    %132 = math.tanh %117 : f32
    %133 = vector.broadcast %132 : f32 to vector<8x1xf32>
    %134 = arith.select %131, %133, %109 : vector<8x1xi1>, vector<8x1xf32>
    %135 = vector.broadcast %125 : i32 to vector<32x1xi32>
    %136 = arith.cmpi eq, %10, %135 : vector<32x1xi32>
    %cst_32 = arith.constant 0xFF800000 : f32
    %137 = vector.broadcast %cst_32 : f32 to vector<32x1xf32>
    %138 = arith.select %136, %137, %113 : vector<32x1xi1>, vector<32x1xf32>
    %139 = vector.shape_cast %138 : vector<32x1xf32> to vector<1x32x1xf32>
    %cst_33 = arith.constant dense<0xFF800000> : vector<1xf32>
    %140 = vector.multi_reduction <maximumf>, %139, %cst_33 [1, 2] : vector<1x32x1xf32> to vector<1xf32>
    %141 = vector.shape_cast %140 : vector<1xf32> to vector<1x1x1xf32>
    %142 = vector.extract %141[0, 0, 0] : f32 from vector<1x1x1xf32>
    %143 = vector.broadcast %142 : f32 to vector<32x1xf32>
    %144 = arith.cmpf oeq, %138, %143 : vector<32x1xf32>
    %c32_i32_34 = arith.constant 32 : i32
    %145 = vector.broadcast %c32_i32_34 : i32 to vector<32x1xi32>
    %146 = arith.select %144, %10, %145 : vector<32x1xi1>, vector<32x1xi32>
    %147 = vector.shape_cast %146 : vector<32x1xi32> to vector<1x32x1xi32>
    %cst_35 = arith.constant dense<2147483647> : vector<1xi32>
    %148 = vector.multi_reduction <minsi>, %147, %cst_35 [1, 2] : vector<1x32x1xi32> to vector<1xi32>
    %149 = vector.shape_cast %148 : vector<1xi32> to vector<1x1x1xi32>
    %150 = vector.extract %149[0, 0, 0] : i32 from vector<1x1x1xi32>
    %c5_i32 = arith.constant 5 : i32
    %151 = vector.broadcast %c5_i32 : i32 to vector<8x1xi32>
    %152 = arith.cmpi eq, %11, %151 : vector<8x1xi32>
    %153 = vector.broadcast %150 : i32 to vector<8x1xi32>
    %154 = arith.select %152, %153, %129 : vector<8x1xi1>, vector<8x1xi32>
    %c5_i32_36 = arith.constant 5 : i32
    %155 = vector.broadcast %c5_i32_36 : i32 to vector<8x1xi32>
    %156 = arith.cmpi eq, %11, %155 : vector<8x1xi32>
    %157 = math.tanh %142 : f32
    %158 = vector.broadcast %157 : f32 to vector<8x1xf32>
    %159 = arith.select %156, %158, %134 : vector<8x1xi1>, vector<8x1xf32>
    %160 = vector.broadcast %150 : i32 to vector<32x1xi32>
    %161 = arith.cmpi eq, %10, %160 : vector<32x1xi32>
    %cst_37 = arith.constant 0xFF800000 : f32
    %162 = vector.broadcast %cst_37 : f32 to vector<32x1xf32>
    %163 = arith.select %161, %162, %138 : vector<32x1xi1>, vector<32x1xf32>
    %164 = vector.shape_cast %163 : vector<32x1xf32> to vector<1x32x1xf32>
    %cst_38 = arith.constant dense<0xFF800000> : vector<1xf32>
    %165 = vector.multi_reduction <maximumf>, %164, %cst_38 [1, 2] : vector<1x32x1xf32> to vector<1xf32>
    %166 = vector.shape_cast %165 : vector<1xf32> to vector<1x1x1xf32>
    %167 = vector.extract %166[0, 0, 0] : f32 from vector<1x1x1xf32>
    %168 = vector.broadcast %167 : f32 to vector<32x1xf32>
    %169 = arith.cmpf oeq, %163, %168 : vector<32x1xf32>
    %c32_i32_39 = arith.constant 32 : i32
    %170 = vector.broadcast %c32_i32_39 : i32 to vector<32x1xi32>
    %171 = arith.select %169, %10, %170 : vector<32x1xi1>, vector<32x1xi32>
    %172 = vector.shape_cast %171 : vector<32x1xi32> to vector<1x32x1xi32>
    %cst_40 = arith.constant dense<2147483647> : vector<1xi32>
    %173 = vector.multi_reduction <minsi>, %172, %cst_40 [1, 2] : vector<1x32x1xi32> to vector<1xi32>
    %174 = vector.shape_cast %173 : vector<1xi32> to vector<1x1x1xi32>
    %175 = vector.extract %174[0, 0, 0] : i32 from vector<1x1x1xi32>
    %c6_i32 = arith.constant 6 : i32
    %176 = vector.broadcast %c6_i32 : i32 to vector<8x1xi32>
    %177 = arith.cmpi eq, %11, %176 : vector<8x1xi32>
    %178 = vector.broadcast %175 : i32 to vector<8x1xi32>
    %179 = arith.select %177, %178, %154 : vector<8x1xi1>, vector<8x1xi32>
    %c6_i32_41 = arith.constant 6 : i32
    %180 = vector.broadcast %c6_i32_41 : i32 to vector<8x1xi32>
    %181 = arith.cmpi eq, %11, %180 : vector<8x1xi32>
    %182 = math.tanh %167 : f32
    %183 = vector.broadcast %182 : f32 to vector<8x1xf32>
    %184 = arith.select %181, %183, %159 : vector<8x1xi1>, vector<8x1xf32>
    %185 = vector.broadcast %175 : i32 to vector<32x1xi32>
    %186 = arith.cmpi eq, %10, %185 : vector<32x1xi32>
    %cst_42 = arith.constant 0xFF800000 : f32
    %187 = vector.broadcast %cst_42 : f32 to vector<32x1xf32>
    %188 = arith.select %186, %187, %163 : vector<32x1xi1>, vector<32x1xf32>
    %189 = vector.shape_cast %188 : vector<32x1xf32> to vector<1x32x1xf32>
    %cst_43 = arith.constant dense<0xFF800000> : vector<1xf32>
    %190 = vector.multi_reduction <maximumf>, %189, %cst_43 [1, 2] : vector<1x32x1xf32> to vector<1xf32>
    %191 = vector.shape_cast %190 : vector<1xf32> to vector<1x1x1xf32>
    %192 = vector.extract %191[0, 0, 0] : f32 from vector<1x1x1xf32>
    %193 = vector.broadcast %192 : f32 to vector<32x1xf32>
    %194 = arith.cmpf oeq, %188, %193 : vector<32x1xf32>
    %c32_i32_44 = arith.constant 32 : i32
    %195 = vector.broadcast %c32_i32_44 : i32 to vector<32x1xi32>
    %196 = arith.select %194, %10, %195 : vector<32x1xi1>, vector<32x1xi32>
    %197 = vector.shape_cast %196 : vector<32x1xi32> to vector<1x32x1xi32>
    %cst_45 = arith.constant dense<2147483647> : vector<1xi32>
    %198 = vector.multi_reduction <minsi>, %197, %cst_45 [1, 2] : vector<1x32x1xi32> to vector<1xi32>
    %199 = vector.shape_cast %198 : vector<1xi32> to vector<1x1x1xi32>
    %200 = vector.extract %199[0, 0, 0] : i32 from vector<1x1x1xi32>
    %c7_i32 = arith.constant 7 : i32
    %201 = vector.broadcast %c7_i32 : i32 to vector<8x1xi32>
    %202 = arith.cmpi eq, %11, %201 : vector<8x1xi32>
    %203 = vector.broadcast %200 : i32 to vector<8x1xi32>
    %204 = arith.select %202, %203, %179 : vector<8x1xi1>, vector<8x1xi32>
    %c7_i32_46 = arith.constant 7 : i32
    %205 = vector.broadcast %c7_i32_46 : i32 to vector<8x1xi32>
    %206 = arith.cmpi eq, %11, %205 : vector<8x1xi32>
    %207 = math.tanh %192 : f32
    %208 = vector.broadcast %207 : f32 to vector<8x1xf32>
    %209 = arith.select %206, %208, %184 : vector<8x1xi1>, vector<8x1xf32>
    %210 = tpu.iota {dimensions = array<i32: 1>} : vector<1x32xi32>
    %211 = vector.broadcast %204 : vector<8x1xi32> to vector<8x32xi32>
    %212 = vector.broadcast %210 : vector<1x32xi32> to vector<8x32xi32>
    %213 = arith.cmpi eq, %211, %212 : vector<8x32xi32>
    %cst_47 = arith.constant 0.000000e+00 : f32
    %214 = vector.shape_cast %209 : vector<8x1xf32> to vector<8x1xf32>
    %215 = vector.broadcast %214 : vector<8x1xf32> to vector<8x32xf32>
    %216 = vector.broadcast %cst_47 : f32 to vector<8x32xf32>
    %217 = arith.select %213, %215, %216 : vector<8x32xi1>, vector<8x32xf32>
    %cst_48 = arith.constant dense<0.000000e+00> : vector<8x16xf32>
    %218 = tpu.matmul %217, %1, %cst_48 {dimension_numbers = #tpu.dot_dimension_numbers<[1], [0], [0], [1], [0, 0, 1, 1], [], []>} : vector<8x32xf32>, vector<32x16xf32>, vector<8x16xf32> -> vector<8x16xf32>
    %219 = tpu.transpose %218, [1, 0] : vector<8x16xf32> -> vector<16x8xf32>
    %c0_49 = arith.constant 0 : index
    %c0_50 = arith.constant 0 : index
    %c0_51 = arith.constant 0 : index
    %220 = vector.load %arg4[%c0_49, %c0_50, %c0_51] : memref<1x16x8xf32, #tpu.memory_space<vmem>>, vector<1x16x8xf32>
    %221 = vector.shape_cast %220 : vector<1x16x8xf32> to vector<16x8xf32>
    %222 = vector.shape_cast %219 : vector<16x8xf32> to vector<1x16x8xf32>
    tpu.vector_store %arg4[%c0_49, %c0_50, %c0_51], %222 {strides = array<i32>} : memref<1x16x8xf32, #tpu.memory_space<vmem>>, vector<1x16x8xf32>,
    return
  }
  func.func @transform_0(%arg0: i32) -> (i32, i32, i32) {
    %c0_i32 = arith.constant 0 : i32
    %c0_i32_0 = arith.constant 0 : i32
    %c0_i32_1 = arith.constant 0 : i32
    return %arg0, %c0_i32, %c0_i32_0 : i32, i32, i32
  }
  func.func @transform_1(%arg0: i32) -> (i32, i32, i32) {
    %c0_i32 = arith.constant 0 : i32
    %c0_i32_0 = arith.constant 0 : i32
    %c0_i32_1 = arith.constant 0 : i32
    return %arg0, %c0_i32, %c0_i32_0 : i32, i32, i32
  }
  func.func @transform_2(%arg0: i32) -> (i32, i32) {
    %c0_i32 = arith.constant 0 : i32
    %c0_i32_0 = arith.constant 0 : i32
    %c0_i32_1 = arith.constant 0 : i32
    return %c0_i32, %c0_i32_0 : i32, i32
  }
  func.func @transform_3(%arg0: i32) -> (i32, i32, i32) {
    %c0_i32 = arith.constant 0 : i32
    %c0_i32_0 = arith.constant 0 : i32
    %c0_i32_1 = arith.constant 0 : i32
    return %arg0, %c0_i32, %c0_i32_0 : i32, i32, i32
  }
}

module attributes {stable_mosaic.version = 11 : i64} {
  func.func @_zw_kernel(%arg0: i32, %arg1: i32, %arg2: memref<1x32x16xf32, #tpu.memory_space<vmem>>, %arg3: memref<1x16x8xf32, #tpu.memory_space<vmem>>, %arg4: memref<1x32x8xbf16, #tpu.memory_space<vmem>>) attributes {dimension_semantics = [#tpu.dimension_semantics<parallel>, #tpu.dimension_semantics<parallel>], iteration_bounds = array<i64: 4, 1>, scalar_prefetch = 0 : i64, scratch_operands = 0 : i64, tpu.core_type = #tpu.core_type<tc>, window_params = [{transform_indices = @transform_0, window_bounds = array<i64: 1, 32, 16>}, {transform_indices = @transform_1, window_bounds = array<i64: 1, 16, 8>}, {transform_indices = @transform_2, window_bounds = array<i64: 1, 32, 8>}]} {
    %c0 = arith.constant 0 : index
    %c0_0 = arith.constant 0 : index
    %c0_1 = arith.constant 0 : index
    %0 = vector.load %arg2[%c0, %c0_0, %c0_1] : memref<1x32x16xf32, #tpu.memory_space<vmem>>, vector<1x32x16xf32>
    %1 = vector.shape_cast %0 : vector<1x32x16xf32> to vector<32x16xf32>
    %c0_2 = arith.constant 0 : index
    %c0_3 = arith.constant 0 : index
    %c0_4 = arith.constant 0 : index
    %2 = vector.load %arg3[%c0_2, %c0_3, %c0_4] : memref<1x16x8xf32, #tpu.memory_space<vmem>>, vector<1x16x8xf32>
    %3 = vector.shape_cast %2 : vector<1x16x8xf32> to vector<16x8xf32>
    %cst = arith.constant dense<0.000000e+00> : vector<32x8xf32>
    %4 = tpu.matmul %1, %3, %cst {dimension_numbers = #tpu.dot_dimension_numbers<[1], [0], [0], [1], [0, 0, 1, 1], [], []>} : vector<32x16xf32>, vector<16x8xf32>, vector<32x8xf32> -> vector<32x8xf32>
    %5 = arith.truncf %4 : vector<32x8xf32> to vector<32x8xbf16>
    %c0_5 = arith.constant 0 : index
    %c0_6 = arith.constant 0 : index
    %c0_7 = arith.constant 0 : index
    %6 = vector.load %arg4[%c0_5, %c0_6, %c0_7] : memref<1x32x8xbf16, #tpu.memory_space<vmem>>, vector<1x32x8xbf16>
    %7 = vector.shape_cast %6 : vector<1x32x8xbf16> to vector<32x8xbf16>
    %8 = vector.shape_cast %5 : vector<32x8xbf16> to vector<1x32x8xbf16>
    tpu.vector_store %arg4[%c0_5, %c0_6, %c0_7], %8 {strides = array<i32>} : memref<1x32x8xbf16, #tpu.memory_space<vmem>>, vector<1x32x8xbf16>,
    return
  }
  func.func @transform_0(%arg0: i32, %arg1: i32) -> (i32, i32, i32) {
    %c0_i32 = arith.constant 0 : i32
    %c0_i32_0 = arith.constant 0 : i32
    return %arg0, %arg1, %c0_i32 : i32, i32, i32
  }
  func.func @transform_1(%arg0: i32, %arg1: i32) -> (i32, i32, i32) {
    %c0_i32 = arith.constant 0 : i32
    %c0_i32_0 = arith.constant 0 : i32
    %c0_i32_1 = arith.constant 0 : i32
    return %arg0, %c0_i32, %c0_i32_0 : i32, i32, i32
  }
  func.func @transform_2(%arg0: i32, %arg1: i32) -> (i32, i32, i32) {
    %c0_i32 = arith.constant 0 : i32
    %c0_i32_0 = arith.constant 0 : i32
    return %arg0, %arg1, %c0_i32 : i32, i32, i32
  }
}

module attributes {stable_mosaic.version = 11 : i64} {
  func.func @_gru_kernel(%arg0: i32, %arg1: memref<4x16x8xf32, #tpu.memory_space<vmem>>, %arg2: memref<48x32xf32, #tpu.memory_space<vmem>>, %arg3: memref<16x16xf32, #tpu.memory_space<vmem>>, %arg4: memref<48x8xf32, #tpu.memory_space<vmem>>, %arg5: memref<16x8xf32, #tpu.memory_space<vmem>>, %arg6: memref<4x16x8xf32, #tpu.memory_space<vmem>>, %arg7: memref<16x8xf32, #tpu.memory_space<vmem>>) attributes {dimension_semantics = [#tpu.dimension_semantics<arbitrary>], iteration_bounds = array<i64: 1>, scalar_prefetch = 0 : i64, scratch_operands = 1 : i64, tpu.core_type = #tpu.core_type<tc>, window_params = [{transform_indices = @transform_0, window_bounds = array<i64: 4, 16, 8>}, {pipeline_mode = #tpu.pipeline_mode<synchronous>, transform_indices = @transform_1, window_bounds = array<i64: 48, 32>}, {pipeline_mode = #tpu.pipeline_mode<synchronous>, transform_indices = @transform_2, window_bounds = array<i64: 16, 16>}, {pipeline_mode = #tpu.pipeline_mode<synchronous>, transform_indices = @transform_3, window_bounds = array<i64: 48, 8>}, {pipeline_mode = #tpu.pipeline_mode<synchronous>, transform_indices = @transform_4, window_bounds = array<i64: 16, 8>}, {transform_indices = @transform_5, window_bounds = array<i64: 4, 16, 8>}]} {
    %c0_i32 = arith.constant 0 : i32
    %0 = arith.cmpi eq, %arg0, %c0_i32 : i32
    %1 = arith.extui %0 : i1 to i32
    %c0_i32_0 = arith.constant 0 : i32
    %2 = arith.cmpi ne, %1, %c0_i32_0 : i32
    scf.if %2 {
      %c0_12 = arith.constant 0 : index
      %c0_13 = arith.constant 0 : index
      %10 = vector.load %arg5[%c0_12, %c0_13] : memref<16x8xf32, #tpu.memory_space<vmem>>, vector<16x8xf32>
      %c0_14 = arith.constant 0 : index
      %c0_15 = arith.constant 0 : index
      %11 = vector.load %arg7[%c0_14, %c0_15] : memref<16x8xf32, #tpu.memory_space<vmem>>, vector<16x8xf32>
      tpu.vector_store %arg7[%c0_14, %c0_15], %10 {strides = array<i32>} : memref<16x8xf32, #tpu.memory_space<vmem>>, vector<16x8xf32>,
    } else {
    }
    %c0 = arith.constant 0 : index
    %c0_1 = arith.constant 0 : index
    %3 = vector.load %arg2[%c0, %c0_1] : memref<48x32xf32, #tpu.memory_space<vmem>>, vector<48x32xf32>
    %c0_2 = arith.constant 0 : index
    %c0_3 = arith.constant 0 : index
    %4 = vector.load %arg3[%c0_2, %c0_3] : memref<16x16xf32, #tpu.memory_space<vmem>>, vector<16x16xf32>
    %c0_4 = arith.constant 0 : index
    %c0_5 = arith.constant 0 : index
    %5 = vector.load %arg4[%c0_4, %c0_5] : memref<48x8xf32, #tpu.memory_space<vmem>>, vector<48x8xf32>
    %c0_6 = arith.constant 0 : index
    %c0_7 = arith.constant 0 : index
    %6 = vector.load %arg7[%c0_6, %c0_7] : memref<16x8xf32, #tpu.memory_space<vmem>>, vector<16x8xf32>
    %c0_i32_8 = arith.constant 0 : i32
    %c4_i32 = arith.constant 4 : i32
    %7 = arith.addi %c0_i32_8, %c4_i32 : i32
    %c1_i32 = arith.constant 1 : i32
    %8 = scf.for %arg8 = %c0_i32_8 to %7 step %c1_i32 iter_args(%arg9 = %6) -> (vector<16x8xf32>)  : i32 {
      %10 = arith.index_cast %arg8 : i32 to index
      %c0_12 = arith.constant 0 : index
      %c0_13 = arith.constant 0 : index
      %11 = vector.load %arg1[%10, %c0_12, %c0_13] : memref<4x16x8xf32, #tpu.memory_space<vmem>>, vector<1x16x8xf32>
      %12 = vector.shape_cast %11 : vector<1x16x8xf32> to vector<16x8xf32>
      %13 = tpu.concatenate %12, %arg9 in 0 : vector<16x8xf32>, vector<16x8xf32> -> vector<32x8xf32>
      %cst = arith.constant dense<0.000000e+00> : vector<48x8xf32>
      %14 = tpu.matmul %3, %13, %cst {dimension_numbers = #tpu.dot_dimension_numbers<[1], [0], [0], [1], [0, 0, 1, 1], [], []>} : vector<48x32xf32>, vector<32x8xf32>, vector<48x8xf32> -> vector<48x8xf32>
      %15 = arith.addf %14, %5 : vector<48x8xf32>
      %16 = vector.extract_strided_slice %15 {offsets = [0, 0], sizes = [16, 8], strides = [1, 1]} : vector<48x8xf32> to vector<16x8xf32>
      %17 = arith.negf %16 : vector<16x8xf32>
      %18 = math.exp %17 : vector<16x8xf32>
      %cst_14 = arith.constant 1.000000e+00 : f32
      %19 = vector.broadcast %cst_14 : f32 to vector<16x8xf32>
      %20 = arith.addf %19, %18 : vector<16x8xf32>
      %21 = arith.divf %19, %20 : vector<16x8xf32>
      %22 = vector.extract_strided_slice %15 {offsets = [16, 0], sizes = [16, 8], strides = [1, 1]} : vector<48x8xf32> to vector<16x8xf32>
      %23 = arith.negf %22 : vector<16x8xf32>
      %24 = math.exp %23 : vector<16x8xf32>
      %cst_15 = arith.constant 1.000000e+00 : f32
      %25 = vector.broadcast %cst_15 : f32 to vector<16x8xf32>
      %26 = arith.addf %25, %24 : vector<16x8xf32>
      %27 = arith.divf %25, %26 : vector<16x8xf32>
      %28 = vector.extract_strided_slice %15 {offsets = [32, 0], sizes = [16, 8], strides = [1, 1]} : vector<48x8xf32> to vector<16x8xf32>
      %29 = arith.mulf %27, %arg9 : vector<16x8xf32>
      %cst_16 = arith.constant dense<0.000000e+00> : vector<16x8xf32>
      %30 = tpu.matmul %4, %29, %cst_16 {dimension_numbers = #tpu.dot_dimension_numbers<[1], [0], [0], [1], [0, 0, 1, 1], [], []>} : vector<16x16xf32>, vector<16x8xf32>, vector<16x8xf32> -> vector<16x8xf32>
      %31 = arith.addf %28, %30 : vector<16x8xf32>
      %32 = math.tanh %31 : vector<16x8xf32>
      %cst_17 = arith.constant 1.000000e+00 : f32
      %33 = vector.broadcast %cst_17 : f32 to vector<16x8xf32>
      %34 = arith.subf %33, %21 : vector<16x8xf32>
      %35 = arith.mulf %34, %arg9 : vector<16x8xf32>
      %36 = arith.mulf %21, %32 : vector<16x8xf32>
      %37 = arith.addf %35, %36 : vector<16x8xf32>
      %38 = arith.index_cast %arg8 : i32 to index
      %c0_18 = arith.constant 0 : index
      %c0_19 = arith.constant 0 : index
      %39 = vector.load %arg6[%38, %c0_18, %c0_19] : memref<4x16x8xf32, #tpu.memory_space<vmem>>, vector<1x16x8xf32>
      %40 = vector.shape_cast %39 : vector<1x16x8xf32> to vector<16x8xf32>
      %41 = vector.shape_cast %37 : vector<16x8xf32> to vector<1x16x8xf32>
      tpu.vector_store %arg6[%38, %c0_18, %c0_19], %41 {strides = array<i32>} : memref<4x16x8xf32, #tpu.memory_space<vmem>>, vector<1x16x8xf32>,
      scf.yield %37 : vector<16x8xf32>
    }
    %c4_i32_9 = arith.constant 4 : i32
    %c0_10 = arith.constant 0 : index
    %c0_11 = arith.constant 0 : index
    %9 = vector.load %arg7[%c0_10, %c0_11] : memref<16x8xf32, #tpu.memory_space<vmem>>, vector<16x8xf32>
    tpu.vector_store %arg7[%c0_10, %c0_11], %8 {strides = array<i32>} : memref<16x8xf32, #tpu.memory_space<vmem>>, vector<16x8xf32>,
    return
  }
  func.func @transform_0(%arg0: i32) -> (i32, i32, i32) {
    %c0_i32 = arith.constant 0 : i32
    %c0_i32_0 = arith.constant 0 : i32
    %c0_i32_1 = arith.constant 0 : i32
    return %arg0, %c0_i32, %c0_i32_0 : i32, i32, i32
  }
  func.func @transform_1(%arg0: i32) -> (i32, i32) {
    %c0_i32 = arith.constant 0 : i32
    %c0_i32_0 = arith.constant 0 : i32
    %c0_i32_1 = arith.constant 0 : i32
    return %c0_i32, %c0_i32_0 : i32, i32
  }
  func.func @transform_2(%arg0: i32) -> (i32, i32) {
    %c0_i32 = arith.constant 0 : i32
    %c0_i32_0 = arith.constant 0 : i32
    %c0_i32_1 = arith.constant 0 : i32
    return %c0_i32, %c0_i32_0 : i32, i32
  }
  func.func @transform_3(%arg0: i32) -> (i32, i32) {
    %c0_i32 = arith.constant 0 : i32
    %c0_i32_0 = arith.constant 0 : i32
    %c0_i32_1 = arith.constant 0 : i32
    return %c0_i32, %c0_i32_0 : i32, i32
  }
  func.func @transform_4(%arg0: i32) -> (i32, i32) {
    %c0_i32 = arith.constant 0 : i32
    %c0_i32_0 = arith.constant 0 : i32
    %c0_i32_1 = arith.constant 0 : i32
    return %c0_i32, %c0_i32_0 : i32, i32
  }
  func.func @transform_5(%arg0: i32) -> (i32, i32, i32) {
    %c0_i32 = arith.constant 0 : i32
    %c0_i32_0 = arith.constant 0 : i32
    %c0_i32_1 = arith.constant 0 : i32
    return %arg0, %c0_i32, %c0_i32_0 : i32, i32, i32
  }
}

module attributes {stable_mosaic.version = 11 : i64} {
  func.func @_gcn_kernel(%arg0: i32, %arg1: i32, %arg2: memref<1x32x32xbf16, #tpu.memory_space<vmem>>, %arg3: memref<1x32x8xbf16, #tpu.memory_space<vmem>>, %arg4: memref<1x32x8xf32, #tpu.memory_space<vmem>>) attributes {dimension_semantics = [#tpu.dimension_semantics<parallel>, #tpu.dimension_semantics<parallel>], iteration_bounds = array<i64: 4, 1>, scalar_prefetch = 0 : i64, scratch_operands = 0 : i64, tpu.core_type = #tpu.core_type<tc>, window_params = [{transform_indices = @transform_0, window_bounds = array<i64: 1, 32, 32>}, {transform_indices = @transform_1, window_bounds = array<i64: 1, 32, 8>}, {transform_indices = @transform_2, window_bounds = array<i64: 1, 32, 8>}]} {
    %c0 = arith.constant 0 : index
    %c0_0 = arith.constant 0 : index
    %c0_1 = arith.constant 0 : index
    %0 = vector.load %arg2[%c0, %c0_0, %c0_1] : memref<1x32x32xbf16, #tpu.memory_space<vmem>>, vector<1x32x32xbf16>
    %1 = vector.shape_cast %0 : vector<1x32x32xbf16> to vector<32x32xbf16>
    %c0_2 = arith.constant 0 : index
    %c0_3 = arith.constant 0 : index
    %c0_4 = arith.constant 0 : index
    %2 = vector.load %arg3[%c0_2, %c0_3, %c0_4] : memref<1x32x8xbf16, #tpu.memory_space<vmem>>, vector<1x32x8xbf16>
    %3 = vector.shape_cast %2 : vector<1x32x8xbf16> to vector<32x8xbf16>
    %cst = arith.constant dense<0.000000e+00> : vector<32x8xf32>
    %4 = tpu.matmul %1, %3, %cst {dimension_numbers = #tpu.dot_dimension_numbers<[1], [0], [0], [1], [0, 0, 1, 1], [], []>} : vector<32x32xbf16>, vector<32x8xbf16>, vector<32x8xf32> -> vector<32x8xf32>
    %cst_5 = arith.constant 0.000000e+00 : f32
    %5 = vector.broadcast %cst_5 : f32 to vector<32x8xf32>
    %6 = arith.maximumf %4, %5 : vector<32x8xf32>
    %c0_6 = arith.constant 0 : index
    %c0_7 = arith.constant 0 : index
    %c0_8 = arith.constant 0 : index
    %7 = vector.load %arg4[%c0_6, %c0_7, %c0_8] : memref<1x32x8xf32, #tpu.memory_space<vmem>>, vector<1x32x8xf32>
    %8 = vector.shape_cast %7 : vector<1x32x8xf32> to vector<32x8xf32>
    %9 = vector.shape_cast %6 : vector<32x8xf32> to vector<1x32x8xf32>
    tpu.vector_store %arg4[%c0_6, %c0_7, %c0_8], %9 {strides = array<i32>} : memref<1x32x8xf32, #tpu.memory_space<vmem>>, vector<1x32x8xf32>,
    return
  }
  func.func @transform_0(%arg0: i32, %arg1: i32) -> (i32, i32, i32) {
    %c0_i32 = arith.constant 0 : i32
    %c0_i32_0 = arith.constant 0 : i32
    return %arg0, %arg1, %c0_i32 : i32, i32, i32
  }
  func.func @transform_1(%arg0: i32, %arg1: i32) -> (i32, i32, i32) {
    %c0_i32 = arith.constant 0 : i32
    %c0_i32_0 = arith.constant 0 : i32
    %c0_i32_1 = arith.constant 0 : i32
    return %arg0, %c0_i32, %c0_i32_0 : i32, i32, i32
  }
  func.func @transform_2(%arg0: i32, %arg1: i32) -> (i32, i32, i32) {
    %c0_i32 = arith.constant 0 : i32
    %c0_i32_0 = arith.constant 0 : i32
    return %arg0, %arg1, %c0_i32 : i32, i32, i32
  }
}

</mosaic_0001>

<llo_original>
// kernel: _grcu_forward_impl.7
$region0: #{_grcu_forward_impl.7}
  #allocation0 [shape = 'u32[]', space=smem, size = 0x4, offset = 0x4, fixed_abs, tag = 'smem constant byte address 0x4 - core index']
  #allocation1 [shape = 'u32[144,128]{1,0:T(1,128)}', space=vmem, size = 0x12000, scoped, tag = 'internal scratch']
  %s0 = inlined_call_operand.vmem [shape: bf16[4,32,32], index: 0, kind: input, shape index: {}]
  %s1 = inlined_call_operand.vmem [shape: bf16[4,32,8], index: 1, kind: input, shape index: {}]
  %s2 = inlined_call_operand.vmem [shape: f32[4,32,8], index: 2, kind: output, shape index: {}]
  %s3 = sld [smem:[#allocation0]]
  $region41: #{_grcu_forward_impl.7} parent=0
    _
  %s5 = ssub.s32 1, %s3
  %s6 = scalar_select 0, %s5, %s3
  loop: start=0, step=1, limit=6
  $region2: #{_grcu_forward_impl.7} parent=0 // loop_pre_header
    _
  $region3: #{_grcu_forward_impl.7} parent=0 // loop_header
    %s8 = sphi 0, %s12
    %p9 = scmp.ge.s32.totalorder %s8, 6
    %s15 = sphi 0, %s27
    %s16 = sphi 0, %s23
    %s17 = sphi 0, %s15
    %s18 = sphi 0, %s16
    %s19 = sphi 0, %s17
    %s20 = sphi 0, %s18
    %s32 = sphi 0, %s34
    %s35 = sphi 0, %s32
    %s36 = sphi 0, %s35
    %s52 = sphi 0, %s36
    %s58 = sphi 0, %s60
    %s61 = sphi 0, %s58
    %s62 = sphi 0, %s61
    %s78 = sphi 0, %s62
    %s86 = sphi 0, %s88
    %s89 = sphi 0, %s86
    %s90 = sphi 0, %s89
    %s106 = sphi 0, %s90
  $region4: #{_grcu_forward_impl.7} parent=0 // loop_header_branch
    %11 = sbr.rel (%p9) target = $region8
  $region5: #{_grcu_forward_impl.7} parent=0 // loop_body
    %s13 = ssub.s32 %s8, 1
    %s14 = ssub.s32 %s8, 2
    %s21 = sadd.s32 1, %s16
    %p22 = scmp.ge.s32.totalorder %s21, 1
    %s23 = scalar_select %p22, 0, %s21
    %s24 = sadd.s32 1, %s15
    %s25 = scalar_select %p22, %s24, %s15
    %p26 = scmp.ge.s32.totalorder %s25, 4
    %s27 = scalar_select %p26, 0, %s25
    %s28 = ssub.s32 %s15, %s27
    %s29 = ssub.s32 %s16, %s23
    %s30 = sor.u32 %s28, %s29
    %p31 = scmp.eq.s32.totalorder %s30, 0
    %s33 = sadd.s32 %s32, 1
    %s34 = scalar_select %p31, %s32, %s33
    %p37 = pneg %p31
    %p38 = scmp.eq.s32.totalorder %s8, 3
    %p39 = por %p37, %p38
    %p40 = scmp.ne.s32.totalorder %s32, %s35
    %p41 = scmp.eq.s32.totalorder %s8, 0
    %p42 = por %p40, %p41
    %p43 = scmp.ne.s32.totalorder %s32, %s35
    %p44 = scmp.eq.s32.totalorder %s13, 3
    %p45 = por %p43, %p44
    %p46 = scmp.ne.s32.totalorder %s35, %s36
    %p47 = scmp.eq.s32.totalorder %s13, 0
    %p48 = por %p46, %p47
    %p49 = scmp.ne.s32.totalorder %s35, %s36
    %p50 = scmp.eq.s32.totalorder %s14, 3
    %p51 = por %p49, %p50
    %p53 = scmp.ne.s32.totalorder %s36, %s52
    %p54 = scmp.eq.s32.totalorder %s14, 0
    %p55 = por %p53, %p54
    %s56 = ssub.s32 %s15, %s27
    %p57 = scmp.eq.s32.totalorder %s56, 0
    %s59 = sadd.s32 %s58, 1
    %s60 = scalar_select %p57, %s58, %s59
    %p63 = pneg %p57
    %p64 = scmp.eq.s32.totalorder %s8, 3
    %p65 = por %p63, %p64
    %p66 = scmp.ne.s32.totalorder %s58, %s61
    %p67 = scmp.eq.s32.totalorder %s8, 0
    %p68 = por %p66, %p67
    %p69 = scmp.ne.s32.totalorder %s58, %s61
    %p70 = scmp.eq.s32.totalorder %s13, 3
    %p71 = por %p69, %p70
    %p72 = scmp.ne.s32.totalorder %s61, %s62
    %p73 = scmp.eq.s32.totalorder %s13, 0
    %p74 = por %p72, %p73
    %p75 = scmp.ne.s32.totalorder %s61, %s62
    %p76 = scmp.eq.s32.totalorder %s14, 3
    %p77 = por %p75, %p76
    %p79 = scmp.ne.s32.totalorder %s62, %s78
    %p80 = scmp.eq.s32.totalorder %s14, 0
    %p81 = por %p79, %p80
    %s82 = ssub.s32 %s15, %s27
    %s83 = ssub.s32 %s16, %s23
    %s84 = sor.u32 %s82, %s83
    %p85 = scmp.eq.s32.totalorder %s84, 0
    %s87 = sadd.s32 %s86, 1
    %s88 = scalar_select %p85, %s86, %s87
    %p91 = pneg %p85
    %p92 = scmp.eq.s32.totalorder %s8, 3
    %p93 = por %p91, %p92
    %p94 = scmp.ne.s32.totalorder %s86, %s89
    %p95 = scmp.eq.s32.totalorder %s8, 0
    %p96 = por %p94, %p95
    %p97 = scmp.ne.s32.totalorder %s86, %s89
    %p98 = scmp.eq.s32.totalorder %s13, 3
    %p99 = por %p97, %p98
    %p100 = scmp.ne.s32.totalorder %s89, %s90
    %p101 = scmp.eq.s32.totalorder %s13, 0
    %p102 = por %p100, %p101
    %p103 = scmp.ne.s32.totalorder %s89, %s90
    %p104 = scmp.eq.s32.totalorder %s14, 3
    %p105 = por %p103, %p104
    %p107 = scmp.ne.s32.totalorder %s90, %s106
    %p108 = scmp.eq.s32.totalorder %s14, 0
    %p109 = por %p107, %p108
    %p110 = scmp.le.s32.totalorder 1, %s8
    %p111 = scmp.lt.s32.totalorder %s8, 5
    %p112 = pnand %p110, %p111
    %p113 = pneg %p112
    // Predicated region
    $region9: #{_grcu_forward_impl.7} parent=5 // pred_check
      _
    $region10: #{_grcu_forward_impl.7} parent=5 // pred_check_branch
      %115 = sbr.rel (%p112) target = $region12
    $region11: #{_grcu_forward_impl.7} parent=5 // pred_region
      %s116 = ssub.s32 %s8, 1
    $region12: #{_grcu_forward_impl.7} parent=5 // pred_fallthru
      _
    %p117 = scmp.lt.s32.totalorder %s8, 4
    // Predicated region
    $region13: #{_grcu_forward_impl.7} parent=5 // pred_check
      %p118 = pneg %p117
    $region14: #{_grcu_forward_impl.7} parent=5 // pred_check_branch
      %120 = sbr.rel (%p118) target = $region16
    $region15: #{_grcu_forward_impl.7} parent=5 // pred_region
      // Predicated region
      $region17: #{_grcu_forward_impl.7} parent=15 // pred_check
        %p121 = pneg %p42
      $region18: #{_grcu_forward_impl.7} parent=15 // pred_check_branch
        %123 = sbr.rel (%p121) target = $region20
      $region19: #{_grcu_forward_impl.7} parent=15 // pred_region
        %s124 = smul.u32 4, %s16
        %p125 = scmp.lt.s32.totalorder %s15, 3
        %s126 = scalar_select %p125, %s15, 3
        %p127 = scmp.lt.s32.totalorder %s124, 3
        %s128 = scalar_select %p127, %s124, 3
        %s129 = smul.addr %s126, 4
        %s130 = sadd.s32 %s128, %s129
        %s131 = smul.addr %s130, 4
        %s132 = scalar_lea.vmem %s0, %s131
        %s133 = smul.u32 4, %s16
      $region20: #{_grcu_forward_impl.7} parent=15 // pred_fallthru
        _
      // Predicated region
      $region21: #{_grcu_forward_impl.7} parent=15 // pred_check
        %p134 = pneg %p68
      $region22: #{_grcu_forward_impl.7} parent=15 // pred_check_branch
        %136 = sbr.rel (%p134) target = $region24
      $region23: #{_grcu_forward_impl.7} parent=15 // pred_region
        %p137 = scmp.lt.s32.totalorder %s15, 3
        %s138 = scalar_select %p137, %s15, 3
        %s139 = smul.addr %s138, 4
        %s140 = smul.addr %s139, 4
        %s141 = scalar_lea.vmem %s1, %s140
      $region24: #{_grcu_forward_impl.7} parent=15 // pred_fallthru
        _
    $region16: #{_grcu_forward_impl.7} parent=5 // pred_fallthru
      _
    %p142 = scmp.le.s32.totalorder 1, %s8
    %p143 = scmp.lt.s32.totalorder %s8, 5
    %p144 = pnand %p142, %p143
    %p145 = pneg %p144
    // Predicated region
    $region25: #{_grcu_forward_impl.7} parent=5 // pred_check
      _
    $region26: #{_grcu_forward_impl.7} parent=5 // pred_check_branch
      %147 = sbr.rel (%p144) target = $region28
    $region27: #{_grcu_forward_impl.7} parent=5 // pred_region
      %s148 = ssub.s32 %s8, 1
      %s149 = smul.u32 4, %s18
      %p150 = scmp.lt.s32.totalorder %s17, 3
      %s151 = scalar_select %p150, %s17, 3
      %p152 = scmp.lt.s32.totalorder %s149, 3
      %s153 = scalar_select %p152, %s149, 3
      %s154 = smul.addr %s151, 4
      %s155 = sadd.s32 %s153, %s154
      %s156 = smul.addr %s155, 4
      %s157 = scalar_lea.vmem %s0, %s156
      %p158 = pneg %p48
      %p159 = pneg %p45
      %p160 = scmp.lt.s32.totalorder %s17, 3
      %s161 = scalar_select %p160, %s17, 3
      %s162 = smul.addr %s161, 4
      %s163 = smul.addr %s162, 4
      %s164 = scalar_lea.vmem %s1, %s163
      %p165 = pneg %p74
      %p166 = pneg %p71
      %p167 = pneg %p102
      %p168 = pneg %p99
      %s169 = smul.u32 4, %s18
      %p170 = scmp.lt.s32.totalorder %s17, 3
      %s171 = scalar_select %p170, %s17, 3
      %p172 = scmp.lt.s32.totalorder %s169, 3
      %s173 = scalar_select %p172, %s169, 3
      %s174 = smul.addr %s171, 4
      %s175 = sadd.s32 %s173, %s174
      %s176 = smul.addr %s175, 8
      %s177 = scalar_lea.vmem %s2, %s176
      %s178 = smul.u32 4, %s18
      %p179 = scmp.lt.s32.totalorder %s17, 3
      %s180 = scalar_select %p179, %s17, 3
      %p181 = scmp.lt.s32.totalorder %s178, 3
      %s182 = scalar_select %p181, %s178, 3
      %s183 = smul.addr %s180, 4
      %s184 = sadd.s32 %s182, %s183
      %s185 = smul.addr %s184, 4
      %s186 = scalar_lea.vmem %s0, %s185
      %s187 = smul.u32 4, %s18
      %p188 = scmp.lt.s32.totalorder %s17, 3
      %s189 = scalar_select %p188, %s17, 3
      %s190 = smul.addr %s189, 4
      %s191 = smul.addr %s190, 4
      %s192 = scalar_lea.vmem %s1, %s191
      %s193 = smul.u32 4, %s18
      %p194 = scmp.lt.s32.totalorder %s17, 3
      %s195 = scalar_select %p194, %s17, 3
      %p196 = scmp.lt.s32.totalorder %s193, 3
      %s197 = scalar_select %p196, %s193, 3
      %s198 = smul.addr %s195, 4
      %s199 = sadd.s32 %s197, %s198
      %s200 = smul.addr %s199, 8
      %s201 = scalar_lea.vmem %s2, %s200
      %s202 = smul.u32 4, %s18
      %v204 = vld [vmem:[%s186] sm:$0xf]
      %v205 = vld [vmem:[%s186 + $0x4] sm:$0xf]
      %v206 = vld [vmem:[%s186 + $0x8] sm:$0xf]
      %v207 = vld [vmem:[%s186 + $0xc] sm:$0xf]
      %v208 = vld [vmem:[%s192] sm:$0xf]
      %v209 = vld [vmem:[%s192 + $0x4] sm:$0xf]
      %v210 = vld [vmem:[%s192 + $0x8] sm:$0xf]
      %v211 = vld [vmem:[%s192 + $0xc] sm:$0xf]
      %v216 = vunpack.c.l.b16 %v204
      %v217 = vunpack.c.l.b16 %v205
      %v218 = vunpack.c.l.b16 %v206
      %v219 = vunpack.c.l.b16 %v207
      %v220 = vpack.c.b16 %v217, %v216
      %v221 = vpack.c.b16 %v219, %v218
      %v226 = vunpack.c.l.b16 %v208
      %v227 = vunpack.c.l.b16 %v209
      %v228 = vunpack.c.l.b16 %v210
      %v229 = vunpack.c.l.b16 %v211
      %v230 = vpack.c.b16 %v227, %v226
      %v231 = vpack.c.b16 %v229, %v228
      %vm234 = vcmask 261120
      %v236 = vsel %vm234, %v220, 0
      %v239 = vsel %vm234, %v221, 0
      %241 = vmatprep.subr.bf16.mxu0 0
      %242 = vmatpush1.bf16.msra.mxu0 %v230
      %243 = vmatprep.subr.bf16.mxu0 0
      %244 = vmatpush1.bf16.msra.mxu0 %v231
      %245 = vmatprep.subr.bf16.mxu0 0
      %246 = vmatpush1.bf16.msra.mxu0 0
      %247 = vmatprep.subr.bf16.mxu0 0
      %248 = vmatpush1.bf16.msra.mxu0 0
      %249 = vmatprep.subr.bf16.mxu0 0
      %250 = vmatpush1.bf16.msra.mxu0 0
      %251 = vmatprep.subr.bf16.mxu0 0
      %252 = vmatpush1.bf16.msra.mxu0 0
      %253 = vmatprep.subr.bf16.mxu0 0
      %254 = vmatpush1.bf16.msra.mxu0 0
      %255 = vmatprep.subr.bf16.mxu0 0
      %256 = vmatpush1.bf16.msra.mxu0 0
      %257 = vmatprep.subr.bf16.mxu0 0
      %258 = vmatpush1.bf16.msra.mxu0 0
      %259 = vmatprep.subr.bf16.mxu0 0
      %260 = vmatpush1.bf16.msra.mxu0 0
      %261 = vmatprep.subr.bf16.mxu0 0
      %262 = vmatpush1.bf16.msra.mxu0 0
      %263 = vmatprep.subr.bf16.mxu0 0
      %264 = vmatpush1.bf16.msra.mxu0 0
      %265 = vmatprep.subr.bf16.mxu0 0
      %266 = vmatpush1.bf16.msra.mxu0 0
      %267 = vmatprep.subr.bf16.mxu0 0
      %268 = vmatpush1.bf16.msra.mxu0 0
      %269 = vmatprep.subr.bf16.mxu0 0
      %270 = vmatpush1.bf16.msra.mxu0 0
      %271 = vmatprep.subr.bf16.mxu0 0
      %272 = vmatpush1.bf16.msra.mxu0 0
      %273 = vmatprep.mubr.bf16.mxu0 0
      %274 = vmatmul.mubr.bf16.gmra.mrb[0].mxu0 %v236
      %v275 = vpop.f32.mrb[0].mxu0
      %v276 = vadd.f32 0.0, %v275
      %v277 = vpop.f32.mrb[0].mxu0
      %v278 = vpop.f32.mrb[0].mxu0
      %v279 = vadd.f32 0.0, %v278
      %v280 = vpop.f32.mrb[0].mxu0
      %281 = vmatprep.mubr.bf16.mxu0 0
      %282 = vmatmul.mubr.bf16.gmra.mrb[0].mxu0 %v239
      %v283 = vpop.f32.mrb[0].mxu0
      %v284 = vadd.f32 0.0, %v283
      %v285 = vpop.f32.mrb[0].mxu0
      %v286 = vpop.f32.mrb[0].mxu0
      %v287 = vadd.f32 0.0, %v286
      %v288 = vpop.f32.mrb[0].mxu0
      %289 = vdwg.mxu0
      %v290 = vmax.f32 %v276, 0.0
      %v291 = vmax.f32 %v279, 0.0
      %v292 = vmax.f32 %v284, 0.0
      %v293 = vmax.f32 %v287, 0.0
      %vm294 = vcmask 64512
      %295 = vst.msk [vmem:[%s201] sm:$0xff] %vm294, %v290
      %296 = vst.msk [vmem:[%s201 + $0x8] sm:$0xff] %vm294, %v291
      %297 = vst.msk [vmem:[%s201 + $0x10] sm:$0xff] %vm294, %v292
      %298 = vst.msk [vmem:[%s201 + $0x18] sm:$0xff] %vm294, %v293
      %s299 = smul.u32 4, %s18
      %p300 = scmp.lt.s32.totalorder %s17, 3
      %s301 = scalar_select %p300, %s17, 3
      %p302 = scmp.lt.s32.totalorder %s299, 3
      %s303 = scalar_select %p302, %s299, 3
      %s304 = smul.addr %s301, 4
      %s305 = sadd.s32 %s303, %s304
      %s306 = smul.addr %s305, 8
      %s307 = scalar_lea.vmem %s2, %s306
      // Predicated region
      $region29: #{_grcu_forward_impl.7} parent=27 // pred_check
        %p308 = pneg %p99
      $region30: #{_grcu_forward_impl.7} parent=27 // pred_check_branch
        %310 = sbr.rel (%p308) target = $region32
      $region31: #{_grcu_forward_impl.7} parent=27 // pred_region
        %s311 = smul.u32 4, %s18
      $region32: #{_grcu_forward_impl.7} parent=27 // pred_fallthru
        _
    $region28: #{_grcu_forward_impl.7} parent=5 // pred_fallthru
      _
    %p312 = scmp.le.s32.totalorder 2, %s8
    // Predicated region
    $region33: #{_grcu_forward_impl.7} parent=5 // pred_check
      %p313 = pneg %p312
    $region34: #{_grcu_forward_impl.7} parent=5 // pred_check_branch
      %315 = sbr.rel (%p313) target = $region36
    $region35: #{_grcu_forward_impl.7} parent=5 // pred_region
      %s316 = ssub.s32 %s8, 2
      // Predicated region
      $region37: #{_grcu_forward_impl.7} parent=35 // pred_check
        %p317 = pneg %p105
      $region38: #{_grcu_forward_impl.7} parent=35 // pred_check_branch
        %319 = sbr.rel (%p317) target = $region40
      $region39: #{_grcu_forward_impl.7} parent=35 // pred_region
        %s320 = smul.u32 4, %s20
        %p321 = scmp.lt.s32.totalorder %s19, 3
        %s322 = scalar_select %p321, %s19, 3
        %p323 = scmp.lt.s32.totalorder %s320, 3
        %s324 = scalar_select %p323, %s320, 3
        %s325 = smul.addr %s322, 4
        %s326 = sadd.s32 %s324, %s325
        %s327 = smul.addr %s326, 8
        %s328 = scalar_lea.vmem %s2, %s327
      $region40: #{_grcu_forward_impl.7} parent=35 // pred_fallthru
        _
    $region36: #{_grcu_forward_impl.7} parent=5 // pred_fallthru
      _
  $region6: #{_grcu_forward_impl.7} parent=0 // loop_footer
    %s12 = sadd.s32 1, %s8
  $region7: #{_grcu_forward_impl.7} parent=0 // loop_footer_branch
    %7 = sbr.rel target = $region3
  $region8: #{_grcu_forward_impl.7} parent=0 // loop_exit
    _

// kernel: _grcu_forward_impl.6
$region0: #{_grcu_forward_impl.6}
  #allocation0 [shape = 'u32[]', space=smem, size = 0x4, offset = 0x4, fixed_abs, tag = 'smem constant byte address 0x4 - core index']
  #allocation1 [shape = 'u32[144,128]{1,0:T(1,128)}', space=vmem, size = 0x12000, scoped, tag = 'internal scratch']
  %s0 = inlined_call_operand.vmem [shape: f32[4,32,16], index: 0, kind: input, shape index: {}]
  %s1 = inlined_call_operand.vmem [shape: f32[4,16,8], index: 1, kind: input, shape index: {}]
  %s2 = inlined_call_operand.vmem [shape: bf16[4,32,8], index: 2, kind: output, shape index: {}]
  %s3 = sld [smem:[#allocation0]]
  $region41: #{_grcu_forward_impl.6} parent=0
    _
  %s5 = ssub.s32 1, %s3
  %s6 = scalar_select 0, %s5, %s3
  loop: start=0, step=1, limit=6
  $region2: #{_grcu_forward_impl.6} parent=0 // loop_pre_header
    _
  $region3: #{_grcu_forward_impl.6} parent=0 // loop_header
    %s8 = sphi 0, %s12
    %p9 = scmp.ge.s32.totalorder %s8, 6
    %s15 = sphi 0, %s27
    %s16 = sphi 0, %s23
    %s17 = sphi 0, %s15
    %s18 = sphi 0, %s16
    %s19 = sphi 0, %s17
    %s20 = sphi 0, %s18
    %s32 = sphi 0, %s34
    %s35 = sphi 0, %s32
    %s36 = sphi 0, %s35
    %s52 = sphi 0, %s36
    %s58 = sphi 0, %s60
    %s61 = sphi 0, %s58
    %s62 = sphi 0, %s61
    %s78 = sphi 0, %s62
    %s86 = sphi 0, %s88
    %s89 = sphi 0, %s86
    %s90 = sphi 0, %s89
    %s106 = sphi 0, %s90
  $region4: #{_grcu_forward_impl.6} parent=0 // loop_header_branch
    %11 = sbr.rel (%p9) target = $region8
  $region5: #{_grcu_forward_impl.6} parent=0 // loop_body
    %s13 = ssub.s32 %s8, 1
    %s14 = ssub.s32 %s8, 2
    %s21 = sadd.s32 1, %s16
    %p22 = scmp.ge.s32.totalorder %s21, 1
    %s23 = scalar_select %p22, 0, %s21
    %s24 = sadd.s32 1, %s15
    %s25 = scalar_select %p22, %s24, %s15
    %p26 = scmp.ge.s32.totalorder %s25, 4
    %s27 = scalar_select %p26, 0, %s25
    %s28 = ssub.s32 %s15, %s27
    %s29 = ssub.s32 %s16, %s23
    %s30 = sor.u32 %s28, %s29
    %p31 = scmp.eq.s32.totalorder %s30, 0
    %s33 = sadd.s32 %s32, 1
    %s34 = scalar_select %p31, %s32, %s33
    %p37 = pneg %p31
    %p38 = scmp.eq.s32.totalorder %s8, 3
    %p39 = por %p37, %p38
    %p40 = scmp.ne.s32.totalorder %s32, %s35
    %p41 = scmp.eq.s32.totalorder %s8, 0
    %p42 = por %p40, %p41
    %p43 = scmp.ne.s32.totalorder %s32, %s35
    %p44 = scmp.eq.s32.totalorder %s13, 3
    %p45 = por %p43, %p44
    %p46 = scmp.ne.s32.totalorder %s35, %s36
    %p47 = scmp.eq.s32.totalorder %s13, 0
    %p48 = por %p46, %p47
    %p49 = scmp.ne.s32.totalorder %s35, %s36
    %p50 = scmp.eq.s32.totalorder %s14, 3
    %p51 = por %p49, %p50
    %p53 = scmp.ne.s32.totalorder %s36, %s52
    %p54 = scmp.eq.s32.totalorder %s14, 0
    %p55 = por %p53, %p54
    %s56 = ssub.s32 %s15, %s27
    %p57 = scmp.eq.s32.totalorder %s56, 0
    %s59 = sadd.s32 %s58, 1
    %s60 = scalar_select %p57, %s58, %s59
    %p63 = pneg %p57
    %p64 = scmp.eq.s32.totalorder %s8, 3
    %p65 = por %p63, %p64
    %p66 = scmp.ne.s32.totalorder %s58, %s61
    %p67 = scmp.eq.s32.totalorder %s8, 0
    %p68 = por %p66, %p67
    %p69 = scmp.ne.s32.totalorder %s58, %s61
    %p70 = scmp.eq.s32.totalorder %s13, 3
    %p71 = por %p69, %p70
    %p72 = scmp.ne.s32.totalorder %s61, %s62
    %p73 = scmp.eq.s32.totalorder %s13, 0
    %p74 = por %p72, %p73
    %p75 = scmp.ne.s32.totalorder %s61, %s62
    %p76 = scmp.eq.s32.totalorder %s14, 3
    %p77 = por %p75, %p76
    %p79 = scmp.ne.s32.totalorder %s62, %s78
    %p80 = scmp.eq.s32.totalorder %s14, 0
    %p81 = por %p79, %p80
    %s82 = ssub.s32 %s15, %s27
    %s83 = ssub.s32 %s16, %s23
    %s84 = sor.u32 %s82, %s83
    %p85 = scmp.eq.s32.totalorder %s84, 0
    %s87 = sadd.s32 %s86, 1
    %s88 = scalar_select %p85, %s86, %s87
    %p91 = pneg %p85
    %p92 = scmp.eq.s32.totalorder %s8, 3
    %p93 = por %p91, %p92
    %p94 = scmp.ne.s32.totalorder %s86, %s89
    %p95 = scmp.eq.s32.totalorder %s8, 0
    %p96 = por %p94, %p95
    %p97 = scmp.ne.s32.totalorder %s86, %s89
    %p98 = scmp.eq.s32.totalorder %s13, 3
    %p99 = por %p97, %p98
    %p100 = scmp.ne.s32.totalorder %s89, %s90
    %p101 = scmp.eq.s32.totalorder %s13, 0
    %p102 = por %p100, %p101
    %p103 = scmp.ne.s32.totalorder %s89, %s90
    %p104 = scmp.eq.s32.totalorder %s14, 3
    %p105 = por %p103, %p104
    %p107 = scmp.ne.s32.totalorder %s90, %s106
    %p108 = scmp.eq.s32.totalorder %s14, 0
    %p109 = por %p107, %p108
    %p110 = scmp.le.s32.totalorder 1, %s8
    %p111 = scmp.lt.s32.totalorder %s8, 5
    %p112 = pnand %p110, %p111
    %p113 = pneg %p112
    // Predicated region
    $region9: #{_grcu_forward_impl.6} parent=5 // pred_check
      _
    $region10: #{_grcu_forward_impl.6} parent=5 // pred_check_branch
      %115 = sbr.rel (%p112) target = $region12
    $region11: #{_grcu_forward_impl.6} parent=5 // pred_region
      %s116 = ssub.s32 %s8, 1
    $region12: #{_grcu_forward_impl.6} parent=5 // pred_fallthru
      _
    %p117 = scmp.lt.s32.totalorder %s8, 4
    // Predicated region
    $region13: #{_grcu_forward_impl.6} parent=5 // pred_check
      %p118 = pneg %p117
    $region14: #{_grcu_forward_impl.6} parent=5 // pred_check_branch
      %120 = sbr.rel (%p118) target = $region16
    $region15: #{_grcu_forward_impl.6} parent=5 // pred_region
      // Predicated region
      $region17: #{_grcu_forward_impl.6} parent=15 // pred_check
        %p121 = pneg %p42
      $region18: #{_grcu_forward_impl.6} parent=15 // pred_check_branch
        %123 = sbr.rel (%p121) target = $region20
      $region19: #{_grcu_forward_impl.6} parent=15 // pred_region
        %s124 = smul.u32 4, %s16
        %p125 = scmp.lt.s32.totalorder %s15, 3
        %s126 = scalar_select %p125, %s15, 3
        %p127 = scmp.lt.s32.totalorder %s124, 3
        %s128 = scalar_select %p127, %s124, 3
        %s129 = smul.addr %s126, 4
        %s130 = sadd.s32 %s128, %s129
        %s131 = smul.addr %s130, 8
        %s132 = scalar_lea.vmem %s0, %s131
        %s133 = smul.u32 4, %s16
      $region20: #{_grcu_forward_impl.6} parent=15 // pred_fallthru
        _
      // Predicated region
      $region21: #{_grcu_forward_impl.6} parent=15 // pred_check
        %p134 = pneg %p68
      $region22: #{_grcu_forward_impl.6} parent=15 // pred_check_branch
        %136 = sbr.rel (%p134) target = $region24
      $region23: #{_grcu_forward_impl.6} parent=15 // pred_region
        %p137 = scmp.lt.s32.totalorder %s15, 3
        %s138 = scalar_select %p137, %s15, 3
        %s139 = smul.addr %s138, 2
        %s140 = smul.addr %s139, 8
        %s141 = scalar_lea.vmem %s1, %s140
      $region24: #{_grcu_forward_impl.6} parent=15 // pred_fallthru
        _
    $region16: #{_grcu_forward_impl.6} parent=5 // pred_fallthru
      _
    %p142 = scmp.le.s32.totalorder 1, %s8
    %p143 = scmp.lt.s32.totalorder %s8, 5
    %p144 = pnand %p142, %p143
    %p145 = pneg %p144
    // Predicated region
    $region25: #{_grcu_forward_impl.6} parent=5 // pred_check
      _
    $region26: #{_grcu_forward_impl.6} parent=5 // pred_check_branch
      %147 = sbr.rel (%p144) target = $region28
    $region27: #{_grcu_forward_impl.6} parent=5 // pred_region
      %s148 = ssub.s32 %s8, 1
      %s149 = smul.u32 4, %s18
      %p150 = scmp.lt.s32.totalorder %s17, 3
      %s151 = scalar_select %p150, %s17, 3
      %p152 = scmp.lt.s32.totalorder %s149, 3
      %s153 = scalar_select %p152, %s149, 3
      %s154 = smul.addr %s151, 4
      %s155 = sadd.s32 %s153, %s154
      %s156 = smul.addr %s155, 8
      %s157 = scalar_lea.vmem %s0, %s156
      %p158 = pneg %p48
      %p159 = pneg %p45
      %p160 = scmp.lt.s32.totalorder %s17, 3
      %s161 = scalar_select %p160, %s17, 3
      %s162 = smul.addr %s161, 2
      %s163 = smul.addr %s162, 8
      %s164 = scalar_lea.vmem %s1, %s163
      %p165 = pneg %p74
      %p166 = pneg %p71
      %p167 = pneg %p102
      %p168 = pneg %p99
      %s169 = smul.u32 4, %s18
      %p170 = scmp.lt.s32.totalorder %s17, 3
      %s171 = scalar_select %p170, %s17, 3
      %p172 = scmp.lt.s32.totalorder %s169, 3
      %s173 = scalar_select %p172, %s169, 3
      %s174 = smul.addr %s171, 4
      %s175 = sadd.s32 %s173, %s174
      %s176 = smul.addr %s175, 4
      %s177 = scalar_lea.vmem %s2, %s176
      %s178 = smul.u32 4, %s18
      %p179 = scmp.lt.s32.totalorder %s17, 3
      %s180 = scalar_select %p179, %s17, 3
      %p181 = scmp.lt.s32.totalorder %s178, 3
      %s182 = scalar_select %p181, %s178, 3
      %s183 = smul.addr %s180, 4
      %s184 = sadd.s32 %s182, %s183
      %s185 = smul.addr %s184, 8
      %s186 = scalar_lea.vmem %s0, %s185
      %s187 = smul.u32 4, %s18
      %p188 = scmp.lt.s32.totalorder %s17, 3
      %s189 = scalar_select %p188, %s17, 3
      %s190 = smul.addr %s189, 2
      %s191 = smul.addr %s190, 8
      %s192 = scalar_lea.vmem %s1, %s191
      %s193 = smul.u32 4, %s18
      %p194 = scmp.lt.s32.totalorder %s17, 3
      %s195 = scalar_select %p194, %s17, 3
      %p196 = scmp.lt.s32.totalorder %s193, 3
      %s197 = scalar_select %p196, %s193, 3
      %s198 = smul.addr %s195, 4
      %s199 = sadd.s32 %s197, %s198
      %s200 = smul.addr %s199, 4
      %s201 = scalar_lea.vmem %s2, %s200
      %s202 = smul.u32 4, %s18
      %v203 = vld [vmem:[%s186] sm:$0xff]
      %v204 = vld [vmem:[%s186 + $0x8] sm:$0xff]
      %v205 = vld [vmem:[%s186 + $0x10] sm:$0xff]
      %v206 = vld [vmem:[%s186 + $0x18] sm:$0xff]
      %v207 = vld [vmem:[%s192] sm:$0xff]
      %v208 = vld [vmem:[%s192 + $0x8] sm:$0xff]
      %vm209 = vcmask 130048
      %v211 = vsel %vm209, %v203, 0
      %v214 = vsel %vm209, %v204, 0
      %v217 = vsel %vm209, %v205, 0
      %v220 = vsel %vm209, %v206, 0
      %222 = vmatprep.subr.mxu0 0.0
      %223 = vmatpush1.msra.mxu0 %v207
      %224 = vmatprep.subr.mxu0 0.0
      %225 = vmatpush1.msra.mxu0 %v208
      %226 = vmatprep.subr.mxu0 0.0
      %227 = vmatpush1.msra.mxu0 0.0
      %228 = vmatprep.subr.mxu0 0.0
      %229 = vmatpush1.msra.mxu0 0.0
      %230 = vmatprep.subr.mxu0 0.0
      %231 = vmatpush1.msra.mxu0 0.0
      %232 = vmatprep.subr.mxu0 0.0
      %233 = vmatpush1.msra.mxu0 0.0
      %234 = vmatprep.subr.mxu0 0.0
      %235 = vmatpush1.msra.mxu0 0.0
      %236 = vmatprep.subr.mxu0 0.0
      %237 = vmatpush1.msra.mxu0 0.0
      %238 = vmatprep.subr.mxu0 0.0
      %239 = vmatpush1.msra.mxu0 0.0
      %240 = vmatprep.subr.mxu0 0.0
      %241 = vmatpush1.msra.mxu0 0.0
      %242 = vmatprep.subr.mxu0 0.0
      %243 = vmatpush1.msra.mxu0 0.0
      %244 = vmatprep.subr.mxu0 0.0
      %245 = vmatpush1.msra.mxu0 0.0
      %246 = vmatprep.subr.mxu0 0.0
      %247 = vmatpush1.msra.mxu0 0.0
      %248 = vmatprep.subr.mxu0 0.0
      %249 = vmatpush1.msra.mxu0 0.0
      %250 = vmatprep.subr.mxu0 0.0
      %251 = vmatpush1.msra.mxu0 0.0
      %252 = vmatprep.subr.mxu0 0.0
      %253 = vmatpush1.msra.mxu0 0.0
      %254 = vmatprep.subr.mxu0 0.0
      %255 = vmatpush1.msra.mxu0 0.0
      %256 = vmatprep.subr.mxu0 0.0
      %257 = vmatpush1.msra.mxu0 0.0
      %258 = vmatprep.subr.mxu0 0.0
      %259 = vmatpush1.msra.mxu0 0.0
      %260 = vmatprep.subr.mxu0 0.0
      %261 = vmatpush1.msra.mxu0 0.0
      %262 = vmatprep.subr.mxu0 0.0
      %263 = vmatpush1.msra.mxu0 0.0
      %264 = vmatprep.subr.mxu0 0.0
      %265 = vmatpush1.msra.mxu0 0.0
      %266 = vmatprep.subr.mxu0 0.0
      %267 = vmatpush1.msra.mxu0 0.0
      %268 = vmatprep.subr.mxu0 0.0
      %269 = vmatpush1.msra.mxu0 0.0
      %270 = vmatprep.subr.mxu0 0.0
      %271 = vmatpush1.msra.mxu0 0.0
      %272 = vmatprep.subr.mxu0 0.0
      %273 = vmatpush1.msra.mxu0 0.0
      %274 = vmatprep.subr.mxu0 0.0
      %275 = vmatpush1.msra.mxu0 0.0
      %276 = vmatprep.subr.mxu0 0.0
      %277 = vmatpush1.msra.mxu0 0.0
      %278 = vmatprep.subr.mxu0 0.0
      %279 = vmatpush1.msra.mxu0 0.0
      %280 = vmatprep.subr.mxu0 0.0
      %281 = vmatpush1.msra.mxu0 0.0
      %282 = vmatprep.subr.mxu0 0.0
      %283 = vmatpush1.msra.mxu0 0.0
      %284 = vmatprep.subr.mxu0 0.0
      %285 = vmatpush1.msra.mxu0 0.0
      %286 = vmatprep.mubr.f32.mxu0 0.0
      %287 = vmatmul.mubr.f32.gmra.mrb[0].mxu0 %v211
      %v288 = vpop.f32.mrb[0].mxu0
      %v289 = vadd.f32 0.0, %v288
      %v290 = vpop.f32.mrb[0].mxu0
      %291 = vmatprep.mubr.f32.mxu0 0.0
      %292 = vmatmul.mubr.f32.gmra.mrb[0].mxu0 %v214
      %v293 = vpop.f32.mrb[0].mxu0
      %v294 = vadd.f32 0.0, %v293
      %v295 = vpop.f32.mrb[0].mxu0
      %296 = vmatprep.mubr.f32.mxu0 0.0
      %297 = vmatmul.mubr.f32.gmra.mrb[0].mxu0 %v217
      %v298 = vpop.f32.mrb[0].mxu0
      %v299 = vadd.f32 0.0, %v298
      %v300 = vpop.f32.mrb[0].mxu0
      %301 = vmatprep.mubr.f32.mxu0 0.0
      %302 = vmatmul.mubr.f32.gmra.mrb[0].mxu0 %v220
      %v303 = vpop.f32.mrb[0].mxu0
      %v304 = vadd.f32 0.0, %v303
      %v305 = vpop.f32.mrb[0].mxu0
      %306 = vdwg.mxu0
      %v307 = vpack.c.bf16 %v294, %v289
      %v308 = vpack.c.bf16 %v304, %v299
      %v311 = vunpack.c.l.b16 %v307
      %v312 = vunpack.c.h.b16 %v307
      %v313 = vunpack.c.l.b16 %v308
      %v314 = vunpack.c.h.b16 %v308
      %v315 = vpack.c.b16 %v311, %v311
      %v316 = vpack.c.b16 %v312, %v312
      %v317 = vpack.c.b16 %v313, %v313
      %v318 = vpack.c.b16 %v314, %v314
      %vm323 = vcmask 60416
      %324 = vst.msk [vmem:[%s201] sm:$0xf] %vm323, %v315
      %325 = vst.msk [vmem:[%s201 + $0x4] sm:$0xf] %vm323, %v316
      %326 = vst.msk [vmem:[%s201 + $0x8] sm:$0xf] %vm323, %v317
      %327 = vst.msk [vmem:[%s201 + $0xc] sm:$0xf] %vm323, %v318
      %s328 = smul.u32 4, %s18
      %p329 = scmp.lt.s32.totalorder %s17, 3
      %s330 = scalar_select %p329, %s17, 3
      %p331 = scmp.lt.s32.totalorder %s328, 3
      %s332 = scalar_select %p331, %s328, 3
      %s333 = smul.addr %s330, 4
      %s334 = sadd.s32 %s332, %s333
      %s335 = smul.addr %s334, 4
      %s336 = scalar_lea.vmem %s2, %s335
      // Predicated region
      $region29: #{_grcu_forward_impl.6} parent=27 // pred_check
        %p337 = pneg %p99
      $region30: #{_grcu_forward_impl.6} parent=27 // pred_check_branch
        %339 = sbr.rel (%p337) target = $region32
      $region31: #{_grcu_forward_impl.6} parent=27 // pred_region
        %s340 = smul.u32 4, %s18
      $region32: #{_grcu_forward_impl.6} parent=27 // pred_fallthru
        _
    $region28: #{_grcu_forward_impl.6} parent=5 // pred_fallthru
      _
    %p341 = scmp.le.s32.totalorder 2, %s8
    // Predicated region
    $region33: #{_grcu_forward_impl.6} parent=5 // pred_check
      %p342 = pneg %p341
    $region34: #{_grcu_forward_impl.6} parent=5 // pred_check_branch
      %344 = sbr.rel (%p342) target = $region36
    $region35: #{_grcu_forward_impl.6} parent=5 // pred_region
      %s345 = ssub.s32 %s8, 2
      // Predicated region
      $region37: #{_grcu_forward_impl.6} parent=35 // pred_check
        %p346 = pneg %p105
      $region38: #{_grcu_forward_impl.6} parent=35 // pred_check_branch
        %348 = sbr.rel (%p346) target = $region40
      $region39: #{_grcu_forward_impl.6} parent=35 // pred_region
        %s349 = smul.u32 4, %s20
        %p350 = scmp.lt.s32.totalorder %s19, 3
        %s351 = scalar_select %p350, %s19, 3
        %p352 = scmp.lt.s32.totalorder %s349, 3
        %s353 = scalar_select %p352, %s349, 3
        %s354 = smul.addr %s351, 4
        %s355 = sadd.s32 %s353, %s354
        %s356 = smul.addr %s355, 4
        %s357 = scalar_lea.vmem %s2, %s356
      $region40: #{_grcu_forward_impl.6} parent=35 // pred_fallthru
        _
    $region36: #{_grcu_forward_impl.6} parent=5 // pred_fallthru
      _
  $region6: #{_grcu_forward_impl.6} parent=0 // loop_footer
    %s12 = sadd.s32 1, %s8
  $region7: #{_grcu_forward_impl.6} parent=0 // loop_footer_branch
    %7 = sbr.rel target = $region3
  $region8: #{_grcu_forward_impl.6} parent=0 // loop_exit
    _

// kernel: _grcu_forward_impl.5
$region0: #{_grcu_forward_impl.5}
  #allocation0 [shape = 'u32[]', space=smem, size = 0x4, offset = 0x4, fixed_abs, tag = 'smem constant byte address 0x4 - core index']
  #allocation1 [shape = 'u32[144,128]{1,0:T(1,128)}', space=vmem, size = 0x12000, scoped, tag = 'internal scratch']
  #allocation2 [shape = 'f32[16,8]{1,0:T(8,128)}', space=vmem, size = 0x2000, scoped, tag = 'scratch operand']
  %s0 = inlined_call_operand.vmem [shape: f32[4,16,8], index: 0, kind: input, shape index: {}]
  %s1 = inlined_call_operand.vmem [shape: f32[48,32], index: 1, kind: input, shape index: {}]
  %s2 = inlined_call_operand.vmem [shape: f32[16,16], index: 2, kind: input, shape index: {}]
  %s3 = inlined_call_operand.vmem [shape: f32[48,8], index: 3, kind: input, shape index: {}]
  %s4 = inlined_call_operand.vmem [shape: f32[16,8], index: 4, kind: input, shape index: {}]
  %s5 = inlined_call_operand.vmem [shape: f32[4,16,8], index: 5, kind: output, shape index: {}]
  %s6 = sld [smem:[#allocation0]]
  $region41: #{_grcu_forward_impl.5} parent=0
    _
  %s8 = ssub.s32 1, %s6
  %s9 = scalar_select 0, %s8, %s6
  // Predicated region
  $region2: #{_grcu_forward_impl.5} parent=0 // pred_check
    _
  $region3: #{_grcu_forward_impl.5} parent=0 // pred_check_branch
    %11 = sbr.rel (0) target = $region5
  $region4: #{_grcu_forward_impl.5} parent=0 // pred_region
    _
  $region5: #{_grcu_forward_impl.5} parent=0 // pred_fallthru
    _
  // Predicated region
  $region6: #{_grcu_forward_impl.5} parent=0 // pred_check
    _
  $region7: #{_grcu_forward_impl.5} parent=0 // pred_check_branch
    %13 = sbr.rel (0) target = $region9
  $region8: #{_grcu_forward_impl.5} parent=0 // pred_region
    _
  $region9: #{_grcu_forward_impl.5} parent=0 // pred_fallthru
    _
  // Predicated region
  $region10: #{_grcu_forward_impl.5} parent=0 // pred_check
    _
  $region11: #{_grcu_forward_impl.5} parent=0 // pred_check_branch
    %15 = sbr.rel (0) target = $region13
  $region12: #{_grcu_forward_impl.5} parent=0 // pred_region
    _
  $region13: #{_grcu_forward_impl.5} parent=0 // pred_fallthru
    _
  // Predicated region
  $region14: #{_grcu_forward_impl.5} parent=0 // pred_check
    _
  $region15: #{_grcu_forward_impl.5} parent=0 // pred_check_branch
    %17 = sbr.rel (0) target = $region17
  $region16: #{_grcu_forward_impl.5} parent=0 // pred_region
    _
  $region17: #{_grcu_forward_impl.5} parent=0 // pred_fallthru
    _
  // Predicated region
  $region18: #{_grcu_forward_impl.5} parent=0 // pred_check
    _
  $region19: #{_grcu_forward_impl.5} parent=0 // pred_check_branch
    %19 = sbr.rel (0) target = $region21
  $region20: #{_grcu_forward_impl.5} parent=0 // pred_region
    _
  $region21: #{_grcu_forward_impl.5} parent=0 // pred_fallthru
    _
  %p20 = scmp.eq.s32.totalorder 0, 0
  // Predicated region
  $region22: #{_grcu_forward_impl.5} parent=0 // pred_check
    %p21 = pneg %p20
  $region23: #{_grcu_forward_impl.5} parent=0 // pred_check_branch
    %23 = sbr.rel (%p21) target = $region25
  $region24: #{_grcu_forward_impl.5} parent=0 // pred_region
    %v24 = vld [vmem:[%s4] sm:$0xff]
    %v25 = vld [vmem:[%s4 + $0x8] sm:$0xff]
    %vm26 = vcmask 64512
    %27 = vst.msk [vmem:[#allocation2] sm:$0xff] %vm26, %v24
    %28 = vst.msk [vmem:[#allocation2 + $0x8] sm:$0xff] %vm26, %v25
  $region25: #{_grcu_forward_impl.5} parent=0 // pred_fallthru
    _
  %v29 = vld [vmem:[%s1] sm:$0xff]
  %v30 = vld [vmem:[%s1 + $0x8] sm:$0xff]
  %v31 = vld [vmem:[%s1 + $0x10] sm:$0xff]
  %v32 = vld [vmem:[%s1 + $0x18] sm:$0xff]
  %v33 = vld [vmem:[%s1 + $0x20] sm:$0xff]
  %v34 = vld [vmem:[%s1 + $0x28] sm:$0xff]
  %v35 = vld [vmem:[%s2] sm:$0xff]
  %v36 = vld [vmem:[%s2 + $0x8] sm:$0xff]
  %v37 = vld [vmem:[%s3] sm:$0xff]
  %v38 = vld [vmem:[%s3 + $0x8] sm:$0xff]
  %v39 = vld [vmem:[%s3 + $0x10] sm:$0xff]
  %v40 = vld [vmem:[%s3 + $0x18] sm:$0xff]
  %v41 = vld [vmem:[%s3 + $0x20] sm:$0xff]
  %v42 = vld [vmem:[%s3 + $0x28] sm:$0xff]
  %v43 = vld [vmem:[#allocation2] sm:$0xff]
  %v44 = vld [vmem:[#allocation2 + $0x8] sm:$0xff]
  loop: start=0, step=1, limit=4
  $region26: #{_grcu_forward_impl.5} parent=0 // loop_pre_header
    _
  $region27: #{_grcu_forward_impl.5} parent=0 // loop_header
    %s46 = sphi 0, %s50
    %p47 = scmp.ge.s32.totalorder %s46, 4
    %v51 = vphi %v43, %v289
    %v52 = vphi %v44, %v290
  $region28: #{_grcu_forward_impl.5} parent=0 // loop_header_branch
    %49 = sbr.rel (%p47) target = $region32
  $region29: #{_grcu_forward_impl.5} parent=0 // loop_body
    %s53 = smul.u32 %s46, 16
    %s54 = scalar_lea.vmem %s0, %s53
    %v55 = vld [vmem:[%s54] sm:$0xff]
    %v56 = vld [vmem:[%s54 + $0x8] sm:$0xff]
    %vm57 = vcmask 261120
    %v59 = vsel %vm57, %v29, 0
    %v62 = vsel %vm57, %v30, 0
    %v65 = vsel %vm57, %v31, 0
    %v68 = vsel %vm57, %v32, 0
    %v71 = vsel %vm57, %v33, 0
    %v74 = vsel %vm57, %v34, 0
    %76 = vmatprep.subr.mxu0 0.0
    %77 = vmatpush1.msra.mxu0 %v55
    %78 = vmatprep.subr.mxu0 0.0
    %79 = vmatpush1.msra.mxu0 %v56
    %80 = vmatprep.subr.mxu0 0.0
    %81 = vmatpush1.msra.mxu0 %v51
    %82 = vmatprep.subr.mxu0 0.0
    %83 = vmatpush1.msra.mxu0 %v52
    %84 = vmatprep.subr.mxu0 0.0
    %85 = vmatpush1.msra.mxu0 0.0
    %86 = vmatprep.subr.mxu0 0.0
    %87 = vmatpush1.msra.mxu0 0.0
    %88 = vmatprep.subr.mxu0 0.0
    %89 = vmatpush1.msra.mxu0 0.0
    %90 = vmatprep.subr.mxu0 0.0
    %91 = vmatpush1.msra.mxu0 0.0
    %92 = vmatprep.subr.mxu0 0.0
    %93 = vmatpush1.msra.mxu0 0.0
    %94 = vmatprep.subr.mxu0 0.0
    %95 = vmatpush1.msra.mxu0 0.0
    %96 = vmatprep.subr.mxu0 0.0
    %97 = vmatpush1.msra.mxu0 0.0
    %98 = vmatprep.subr.mxu0 0.0
    %99 = vmatpush1.msra.mxu0 0.0
    %100 = vmatprep.subr.mxu0 0.0
    %101 = vmatpush1.msra.mxu0 0.0
    %102 = vmatprep.subr.mxu0 0.0
    %103 = vmatpush1.msra.mxu0 0.0
    %104 = vmatprep.subr.mxu0 0.0
    %105 = vmatpush1.msra.mxu0 0.0
    %106 = vmatprep.subr.mxu0 0.0
    %107 = vmatpush1.msra.mxu0 0.0
    %108 = vmatprep.subr.mxu0 0.0
    %109 = vmatpush1.msra.mxu0 0.0
    %110 = vmatprep.subr.mxu0 0.0
    %111 = vmatpush1.msra.mxu0 0.0
    %112 = vmatprep.subr.mxu0 0.0
    %113 = vmatpush1.msra.mxu0 0.0
    %114 = vmatprep.subr.mxu0 0.0
    %115 = vmatpush1.msra.mxu0 0.0
    %116 = vmatprep.subr.mxu0 0.0
    %117 = vmatpush1.msra.mxu0 0.0
    %118 = vmatprep.subr.mxu0 0.0
    %119 = vmatpush1.msra.mxu0 0.0
    %120 = vmatprep.subr.mxu0 0.0
    %121 = vmatpush1.msra.mxu0 0.0
    %122 = vmatprep.subr.mxu0 0.0
    %123 = vmatpush1.msra.mxu0 0.0
    %124 = vmatprep.subr.mxu0 0.0
    %125 = vmatpush1.msra.mxu0 0.0
    %126 = vmatprep.subr.mxu0 0.0
    %127 = vmatpush1.msra.mxu0 0.0
    %128 = vmatprep.subr.mxu0 0.0
    %129 = vmatpush1.msra.mxu0 0.0
    %130 = vmatprep.subr.mxu0 0.0
    %131 = vmatpush1.msra.mxu0 0.0
    %132 = vmatprep.subr.mxu0 0.0
    %133 = vmatpush1.msra.mxu0 0.0
    %134 = vmatprep.subr.mxu0 0.0
    %135 = vmatpush1.msra.mxu0 0.0
    %136 = vmatprep.subr.mxu0 0.0
    %137 = vmatpush1.msra.mxu0 0.0
    %138 = vmatprep.subr.mxu0 0.0
    %139 = vmatpush1.msra.mxu0 0.0
    %140 = vmatprep.mubr.f32.mxu0 0.0
    %141 = vmatmul.mubr.f32.gmra.mrb[0].mxu0 %v59
    %v142 = vpop.f32.mrb[0].mxu0
    %v143 = vadd.f32 %v37, %v142
    %v144 = vpop.f32.mrb[0].mxu0
    %145 = vmatprep.mubr.f32.mxu0 0.0
    %146 = vmatmul.mubr.f32.gmra.mrb[0].mxu0 %v62
    %v147 = vpop.f32.mrb[0].mxu0
    %v148 = vadd.f32 %v38, %v147
    %v149 = vpop.f32.mrb[0].mxu0
    %150 = vmatprep.mubr.f32.mxu0 0.0
    %151 = vmatmul.mubr.f32.gmra.mrb[0].mxu0 %v65
    %v152 = vpop.f32.mrb[0].mxu0
    %v153 = vadd.f32 %v39, %v152
    %v154 = vpop.f32.mrb[0].mxu0
    %155 = vmatprep.mubr.f32.mxu0 0.0
    %156 = vmatmul.mubr.f32.gmra.mrb[0].mxu0 %v68
    %v157 = vpop.f32.mrb[0].mxu0
    %v158 = vadd.f32 %v40, %v157
    %v159 = vpop.f32.mrb[0].mxu0
    %160 = vmatprep.mubr.f32.mxu0 0.0
    %161 = vmatmul.mubr.f32.gmra.mrb[0].mxu0 %v71
    %v162 = vpop.f32.mrb[0].mxu0
    %v163 = vadd.f32 %v41, %v162
    %v164 = vpop.f32.mrb[0].mxu0
    %165 = vmatprep.mubr.f32.mxu0 0.0
    %166 = vmatmul.mubr.f32.gmra.mrb[0].mxu0 %v74
    %v167 = vpop.f32.mrb[0].mxu0
    %v168 = vadd.f32 %v42, %v167
    %v169 = vpop.f32.mrb[0].mxu0
    %170 = vdwg.mxu0
    %v171 = vxor.u32 %v143, 2147483648
    %v172 = vxor.u32 %v148, 2147483648
    %v173 = vmul.f32 %v171, 1.442695
    %v174 = vpow.pop %v173
    %v175 = vmul.f32 %v172, 1.442695
    %v176 = vpow.pop %v175
    %v177 = vadd.f32 %v174, 1.0
    %v178 = vadd.f32 %v176, 1.0
    %v179 = vrcp.pop %v177
    %v180 = vmul.f32 1.0, %v179
    %v181 = vrcp.pop %v178
    %v182 = vmul.f32 1.0, %v181
    %v183 = vxor.u32 %v153, 2147483648
    %v184 = vxor.u32 %v158, 2147483648
    %v185 = vmul.f32 %v183, 1.442695
    %v186 = vpow.pop %v185
    %v187 = vmul.f32 %v184, 1.442695
    %v188 = vpow.pop %v187
    %v189 = vadd.f32 %v186, 1.0
    %v190 = vadd.f32 %v188, 1.0
    %v191 = vrcp.pop %v189
    %v192 = vmul.f32 1.0, %v191
    %v193 = vrcp.pop %v190
    %v194 = vmul.f32 1.0, %v193
    %v195 = vmul.f32 %v192, %v51
    %v196 = vmul.f32 %v194, %v52
    %vm197 = vcmask 130048
    %v199 = vsel %vm197, %v35, 0
    %v202 = vsel %vm197, %v36, 0
    %204 = vmatprep.subr.mxu0 0.0
    %205 = vmatpush1.msra.mxu0 %v195
    %206 = vmatprep.subr.mxu0 0.0
    %207 = vmatpush1.msra.mxu0 %v196
    %208 = vmatprep.subr.mxu0 0.0
    %209 = vmatpush1.msra.mxu0 0.0
    %210 = vmatprep.subr.mxu0 0.0
    %211 = vmatpush1.msra.mxu0 0.0
    %212 = vmatprep.subr.mxu0 0.0
    %213 = vmatpush1.msra.mxu0 0.0
    %214 = vmatprep.subr.mxu0 0.0
    %215 = vmatpush1.msra.mxu0 0.0
    %216 = vmatprep.subr.mxu0 0.0
    %217 = vmatpush1.msra.mxu0 0.0
    %218 = vmatprep.subr.mxu0 0.0
    %219 = vmatpush1.msra.mxu0 0.0
    %220 = vmatprep.subr.mxu0 0.0
    %221 = vmatpush1.msra.mxu0 0.0
    %222 = vmatprep.subr.mxu0 0.0
    %223 = vmatpush1.msra.mxu0 0.0
    %224 = vmatprep.subr.mxu0 0.0
    %225 = vmatpush1.msra.mxu0 0.0
    %226 = vmatprep.subr.mxu0 0.0
    %227 = vmatpush1.msra.mxu0 0.0
    %228 = vmatprep.subr.mxu0 0.0
    %229 = vmatpush1.msra.mxu0 0.0
    %230 = vmatprep.subr.mxu0 0.0
    %231 = vmatpush1.msra.mxu0 0.0
    %232 = vmatprep.subr.mxu0 0.0
    %233 = vmatpush1.msra.mxu0 0.0
    %234 = vmatprep.subr.mxu0 0.0
    %235 = vmatpush1.msra.mxu0 0.0
    %236 = vmatprep.subr.mxu0 0.0
    %237 = vmatpush1.msra.mxu0 0.0
    %238 = vmatprep.subr.mxu0 0.0
    %239 = vmatpush1.msra.mxu0 0.0
    %240 = vmatprep.subr.mxu0 0.0
    %241 = vmatpush1.msra.mxu0 0.0
    %242 = vmatprep.subr.mxu0 0.0
    %243 = vmatpush1.msra.mxu0 0.0
    %244 = vmatprep.subr.mxu0 0.0
    %245 = vmatpush1.msra.mxu0 0.0
    %246 = vmatprep.subr.mxu0 0.0
    %247 = vmatpush1.msra.mxu0 0.0
    %248 = vmatprep.subr.mxu0 0.0
    %249 = vmatpush1.msra.mxu0 0.0
    %250 = vmatprep.subr.mxu0 0.0
    %251 = vmatpush1.msra.mxu0 0.0
    %252 = vmatprep.subr.mxu0 0.0
    %253 = vmatpush1.msra.mxu0 0.0
    %254 = vmatprep.subr.mxu0 0.0
    %255 = vmatpush1.msra.mxu0 0.0
    %256 = vmatprep.subr.mxu0 0.0
    %257 = vmatpush1.msra.mxu0 0.0
    %258 = vmatprep.subr.mxu0 0.0
    %259 = vmatpush1.msra.mxu0 0.0
    %260 = vmatprep.subr.mxu0 0.0
    %261 = vmatpush1.msra.mxu0 0.0
    %262 = vmatprep.subr.mxu0 0.0
    %263 = vmatpush1.msra.mxu0 0.0
    %264 = vmatprep.subr.mxu0 0.0
    %265 = vmatpush1.msra.mxu0 0.0
    %266 = vmatprep.subr.mxu0 0.0
    %267 = vmatpush1.msra.mxu0 0.0
    %268 = vmatprep.mubr.f32.mxu0 0.0
    %269 = vmatmul.mubr.f32.gmra.mrb[0].mxu0 %v199
    %v270 = vpop.f32.mrb[0].mxu0
    %v271 = vadd.f32 0.0, %v270
    %v272 = vpop.f32.mrb[0].mxu0
    %273 = vmatprep.mubr.f32.mxu0 0.0
    %274 = vmatmul.mubr.f32.gmra.mrb[0].mxu0 %v202
    %v275 = vpop.f32.mrb[0].mxu0
    %v276 = vadd.f32 0.0, %v275
    %v277 = vpop.f32.mrb[0].mxu0
    %278 = vdwg.mxu0
    %v279 = vadd.f32 %v163, %v271
    %v280 = vadd.f32 %v168, %v276
    %v281 = vtanh.pop %v279
    %v282 = vtanh.pop %v280
    %v283 = vsub.f32 1.0, %v180
    %v284 = vsub.f32 1.0, %v182
    %v285 = vmul.f32 %v283, %v51
    %v286 = vmul.f32 %v284, %v52
    %v287 = vmul.f32 %v180, %v281
    %v288 = vmul.f32 %v182, %v282
    %v289 = vadd.f32 %v285, %v287
    %v290 = vadd.f32 %v286, %v288
    %s291 = scalar_lea.vmem %s5, %s53
    %vm292 = vcmask 64512
    %293 = vst.msk [vmem:[%s291] sm:$0xff] %vm292, %v289
    %294 = vst.msk [vmem:[%s291 + $0x8] sm:$0xff] %vm292, %v290
  $region30: #{_grcu_forward_impl.5} parent=0 // loop_footer
    %s50 = sadd.s32 1, %s46
  $region31: #{_grcu_forward_impl.5} parent=0 // loop_footer_branch
    %45 = sbr.rel target = $region27
  $region32: #{_grcu_forward_impl.5} parent=0 // loop_exit
    _
  %vm295 = vcmask 64512
  %296 = vst.msk [vmem:[#allocation2] sm:$0xff] %vm295, %v51
  %297 = vst.msk [vmem:[#allocation2 + $0x8] sm:$0xff] %vm295, %v52
  // Predicated region
  $region33: #{_grcu_forward_impl.5} parent=0 // pred_check
    _
  $region34: #{_grcu_forward_impl.5} parent=0 // pred_check_branch
    %299 = sbr.rel (0) target = $region36
  $region35: #{_grcu_forward_impl.5} parent=0 // pred_region
    _
  $region36: #{_grcu_forward_impl.5} parent=0 // pred_fallthru
    _
  // Predicated region
  $region37: #{_grcu_forward_impl.5} parent=0 // pred_check
    _
  $region38: #{_grcu_forward_impl.5} parent=0 // pred_check_branch
    %301 = sbr.rel (0) target = $region40
  $region39: #{_grcu_forward_impl.5} parent=0 // pred_region
    _
  $region40: #{_grcu_forward_impl.5} parent=0 // pred_fallthru
    _

// kernel: _grcu_forward_impl.4
$region0: #{_grcu_forward_impl.4}
  #allocation0 [shape = 'u32[]', space=smem, size = 0x4, offset = 0x4, fixed_abs, tag = 'smem constant byte address 0x4 - core index']
  #allocation1 [shape = 'u32[144,128]{1,0:T(1,128)}', space=vmem, size = 0x12000, scoped, tag = 'internal scratch']
  %s0 = inlined_call_operand.vmem [shape: f32[4,32,16], index: 0, kind: input, shape index: {}]
  %s1 = inlined_call_operand.vmem [shape: f32[4,32,1], index: 1, kind: input, shape index: {}]
  %s2 = inlined_call_operand.vmem [shape: f32[1,16], index: 2, kind: input, shape index: {}]
  %s3 = inlined_call_operand.vmem [shape: f32[4,16,8], index: 3, kind: output, shape index: {}]
  %s4 = sld [smem:[#allocation0]]
  $region45: #{_grcu_forward_impl.4} parent=0
    _
  %s6 = ssub.s32 1, %s4
  %s7 = scalar_select 0, %s6, %s4
  loop: start=0, step=1, limit=6
  $region2: #{_grcu_forward_impl.4} parent=0 // loop_pre_header
    _
  $region3: #{_grcu_forward_impl.4} parent=0 // loop_header
    %s9 = sphi 0, %s13
    %p10 = scmp.ge.s32.totalorder %s9, 6
    %s19 = sphi 0, %s21
    %s22 = sphi 0, %s19
    %s23 = sphi 0, %s22
    %s39 = sphi 0, %s23
    %s45 = sphi 0, %s47
    %s48 = sphi 0, %s45
    %s49 = sphi 0, %s48
    %s65 = sphi 0, %s49
    %s69 = sphi 0, %s69
    %s71 = sphi 0, %s69
    %s72 = sphi 0, %s71
    %s86 = sphi 0, %s72
    %s92 = sphi 0, %s94
    %s95 = sphi 0, %s92
    %s96 = sphi 0, %s95
    %s112 = sphi 0, %s96
  $region4: #{_grcu_forward_impl.4} parent=0 // loop_header_branch
    %12 = sbr.rel (%p10) target = $region8
  $region5: #{_grcu_forward_impl.4} parent=0 // loop_body
    %s14 = ssub.s32 %s9, 1
    %s15 = ssub.s32 %s9, 2
    %s16 = sadd.s32 %s9, 1
    %s17 = ssub.s32 %s9, %s16
    %p18 = scmp.eq.s32.totalorder %s17, 0
    %s20 = sadd.s32 %s19, 1
    %s21 = scalar_select %p18, %s19, %s20
    %p24 = pneg %p18
    %p25 = scmp.eq.s32.totalorder %s9, 3
    %p26 = por %p24, %p25
    %p27 = scmp.ne.s32.totalorder %s19, %s22
    %p28 = scmp.eq.s32.totalorder %s9, 0
    %p29 = por %p27, %p28
    %p30 = scmp.ne.s32.totalorder %s19, %s22
    %p31 = scmp.eq.s32.totalorder %s14, 3
    %p32 = por %p30, %p31
    %p33 = scmp.ne.s32.totalorder %s22, %s23
    %p34 = scmp.eq.s32.totalorder %s14, 0
    %p35 = por %p33, %p34
    %p36 = scmp.ne.s32.totalorder %s22, %s23
    %p37 = scmp.eq.s32.totalorder %s15, 3
    %p38 = por %p36, %p37
    %p40 = scmp.ne.s32.totalorder %s23, %s39
    %p41 = scmp.eq.s32.totalorder %s15, 0
    %p42 = por %p40, %p41
    %s43 = ssub.s32 %s9, %s16
    %p44 = scmp.eq.s32.totalorder %s43, 0
    %s46 = sadd.s32 %s45, 1
    %s47 = scalar_select %p44, %s45, %s46
    %p50 = pneg %p44
    %p51 = scmp.eq.s32.totalorder %s9, 3
    %p52 = por %p50, %p51
    %p53 = scmp.ne.s32.totalorder %s45, %s48
    %p54 = scmp.eq.s32.totalorder %s9, 0
    %p55 = por %p53, %p54
    %p56 = scmp.ne.s32.totalorder %s45, %s48
    %p57 = scmp.eq.s32.totalorder %s14, 3
    %p58 = por %p56, %p57
    %p59 = scmp.ne.s32.totalorder %s48, %s49
    %p60 = scmp.eq.s32.totalorder %s14, 0
    %p61 = por %p59, %p60
    %p62 = scmp.ne.s32.totalorder %s48, %s49
    %p63 = scmp.eq.s32.totalorder %s15, 3
    %p64 = por %p62, %p63
    %p66 = scmp.ne.s32.totalorder %s49, %s65
    %p67 = scmp.eq.s32.totalorder %s15, 0
    %p68 = por %p66, %p67
    %s70 = sadd.s32 %s69, 1
    %p73 = scmp.eq.s32.totalorder %s9, 3
    %p74 = scmp.ne.s32.totalorder %s69, %s71
    %p75 = scmp.eq.s32.totalorder %s9, 0
    %p76 = por %p74, %p75
    %p77 = scmp.ne.s32.totalorder %s69, %s71
    %p78 = scmp.eq.s32.totalorder %s14, 3
    %p79 = por %p77, %p78
    %p80 = scmp.ne.s32.totalorder %s71, %s72
    %p81 = scmp.eq.s32.totalorder %s14, 0
    %p82 = por %p80, %p81
    %p83 = scmp.ne.s32.totalorder %s71, %s72
    %p84 = scmp.eq.s32.totalorder %s15, 3
    %p85 = por %p83, %p84
    %p87 = scmp.ne.s32.totalorder %s72, %s86
    %p88 = scmp.eq.s32.totalorder %s15, 0
    %p89 = por %p87, %p88
    %s90 = ssub.s32 %s9, %s16
    %p91 = scmp.eq.s32.totalorder %s90, 0
    %s93 = sadd.s32 %s92, 1
    %s94 = scalar_select %p91, %s92, %s93
    %p97 = pneg %p91
    %p98 = scmp.eq.s32.totalorder %s9, 3
    %p99 = por %p97, %p98
    %p100 = scmp.ne.s32.totalorder %s92, %s95
    %p101 = scmp.eq.s32.totalorder %s9, 0
    %p102 = por %p100, %p101
    %p103 = scmp.ne.s32.totalorder %s92, %s95
    %p104 = scmp.eq.s32.totalorder %s14, 3
    %p105 = por %p103, %p104
    %p106 = scmp.ne.s32.totalorder %s95, %s96
    %p107 = scmp.eq.s32.totalorder %s14, 0
    %p108 = por %p106, %p107
    %p109 = scmp.ne.s32.totalorder %s95, %s96
    %p110 = scmp.eq.s32.totalorder %s15, 3
    %p111 = por %p109, %p110
    %p113 = scmp.ne.s32.totalorder %s96, %s112
    %p114 = scmp.eq.s32.totalorder %s15, 0
    %p115 = por %p113, %p114
    %p116 = scmp.le.s32.totalorder 1, %s9
    %p117 = scmp.lt.s32.totalorder %s9, 5
    %p118 = pnand %p116, %p117
    %p119 = pneg %p118
    // Predicated region
    $region9: #{_grcu_forward_impl.4} parent=5 // pred_check
      _
    $region10: #{_grcu_forward_impl.4} parent=5 // pred_check_branch
      %121 = sbr.rel (%p118) target = $region12
    $region11: #{_grcu_forward_impl.4} parent=5 // pred_region
      %s122 = ssub.s32 %s9, 1
      // Predicated region
      $region13: #{_grcu_forward_impl.4} parent=11 // pred_check
        %p123 = pneg %p82
      $region14: #{_grcu_forward_impl.4} parent=11 // pred_check_branch
        %125 = sbr.rel (%p123) target = $region16
      $region15: #{_grcu_forward_impl.4} parent=11 // pred_region
        _
      $region16: #{_grcu_forward_impl.4} parent=11 // pred_fallthru
        _
    $region12: #{_grcu_forward_impl.4} parent=5 // pred_fallthru
      _
    %p126 = scmp.lt.s32.totalorder %s9, 4
    // Predicated region
    $region17: #{_grcu_forward_impl.4} parent=5 // pred_check
      %p127 = pneg %p126
    $region18: #{_grcu_forward_impl.4} parent=5 // pred_check_branch
      %129 = sbr.rel (%p127) target = $region20
    $region19: #{_grcu_forward_impl.4} parent=5 // pred_region
      // Predicated region
      $region21: #{_grcu_forward_impl.4} parent=19 // pred_check
        %p130 = pneg %p29
      $region22: #{_grcu_forward_impl.4} parent=19 // pred_check_branch
        %132 = sbr.rel (%p130) target = $region24
      $region23: #{_grcu_forward_impl.4} parent=19 // pred_region
        %p133 = scmp.lt.s32.totalorder %s9, 3
        %s134 = scalar_select %p133, %s9, 3
        %s135 = smul.addr %s134, 4
        %s136 = smul.addr %s135, 8
        %s137 = scalar_lea.vmem %s0, %s136
      $region24: #{_grcu_forward_impl.4} parent=19 // pred_fallthru
        _
      // Predicated region
      $region25: #{_grcu_forward_impl.4} parent=19 // pred_check
        %p138 = pneg %p55
      $region26: #{_grcu_forward_impl.4} parent=19 // pred_check_branch
        %140 = sbr.rel (%p138) target = $region28
      $region27: #{_grcu_forward_impl.4} parent=19 // pred_region
        %p141 = scmp.lt.s32.totalorder %s9, 3
        %s142 = scalar_select %p141, %s9, 3
        %s143 = smul.addr %s142, 4
        %s144 = smul.addr %s143, 8
        %s145 = scalar_lea.vmem %s1, %s144
      $region28: #{_grcu_forward_impl.4} parent=19 // pred_fallthru
        _
    $region20: #{_grcu_forward_impl.4} parent=5 // pred_fallthru
      _
    %p146 = scmp.le.s32.totalorder 1, %s9
    %p147 = scmp.lt.s32.totalorder %s9, 5
    %p148 = pnand %p146, %p147
    %p149 = pneg %p148
    // Predicated region
    $region29: #{_grcu_forward_impl.4} parent=5 // pred_check
      _
    $region30: #{_grcu_forward_impl.4} parent=5 // pred_check_branch
      %151 = sbr.rel (%p148) target = $region32
    $region31: #{_grcu_forward_impl.4} parent=5 // pred_region
      %s152 = ssub.s32 %s9, 1
      %p153 = scmp.lt.s32.totalorder %s14, 3
      %s154 = scalar_select %p153, %s14, 3
      %s155 = smul.addr %s154, 4
      %s156 = smul.addr %s155, 8
      %s157 = scalar_lea.vmem %s0, %s156
      %p158 = pneg %p35
      %p159 = pneg %p32
      %p160 = scmp.lt.s32.totalorder %s14, 3
      %s161 = scalar_select %p160, %s14, 3
      %s162 = smul.addr %s161, 4
      %s163 = smul.addr %s162, 8
      %s164 = scalar_lea.vmem %s1, %s163
      %p165 = pneg %p61
      %p166 = pneg %p58
      %p167 = pneg %p82
      %p168 = pneg %p79
      %p169 = pneg %p108
      %p170 = pneg %p105
      %p171 = scmp.lt.s32.totalorder %s14, 3
      %s172 = scalar_select %p171, %s14, 3
      %s173 = smul.addr %s172, 2
      %s174 = smul.addr %s173, 8
      %s175 = scalar_lea.vmem %s3, %s174
      %p176 = scmp.lt.s32.totalorder %s14, 3
      %s177 = scalar_select %p176, %s14, 3
      %s178 = smul.addr %s177, 4
      %s179 = smul.addr %s178, 8
      %s180 = scalar_lea.vmem %s0, %s179
      %p181 = scmp.lt.s32.totalorder %s14, 3
      %s182 = scalar_select %p181, %s14, 3
      %s183 = smul.addr %s182, 4
      %s184 = smul.addr %s183, 8
      %s185 = scalar_lea.vmem %s1, %s184
      %p186 = scmp.lt.s32.totalorder %s14, 3
      %s187 = scalar_select %p186, %s14, 3
      %s188 = smul.addr %s187, 2
      %s189 = smul.addr %s188, 8
      %s190 = scalar_lea.vmem %s3, %s189
      %v191 = vld [vmem:[%s180] sm:$0xff]
      %v192 = vld [vmem:[%s180 + $0x8] sm:$0xff]
      %v193 = vld [vmem:[%s180 + $0x10] sm:$0xff]
      %v194 = vld [vmem:[%s180 + $0x18] sm:$0xff]
      %v195 = vld [vmem:[%s185] sm:$0xff]
      %v196 = vld [vmem:[%s185 + $0x8] sm:$0xff]
      %v197 = vld [vmem:[%s185 + $0x10] sm:$0xff]
      %v198 = vld [vmem:[%s185 + $0x18] sm:$0xff]
      %v199 = vld [vmem:[%s2] sm:$0x1]
      %v201 = vlaneseq
      %v202 = vshrl.u32 %v201, 7
      %v203 = vsub.s32 0, %v202
      %v204 = vrot.slane %v199, %v203
      %v206 = vmul.f32 %v191, %v204
      %v207 = vmul.f32 %v192, %v204
      %v208 = vmul.f32 %v193, %v204
      %v209 = vmul.f32 %v194, %v204
      %vm210 = vcmask 130048
      %v211 = vsel %vm210, %v206, 0.0
      %212 = vadd.xlane.f32.xlu0 %v211
      %v213 = vpop.xlane.xlu0 %212
      %v214 = vsel %vm210, %v207, 0.0
      %215 = vadd.xlane.f32.xlu0 %v214
      %v216 = vpop.xlane.xlu0 %215
      %v217 = vsel %vm210, %v208, 0.0
      %218 = vadd.xlane.f32.xlu0 %v217
      %v219 = vpop.xlane.xlu0 %218
      %v220 = vsel %vm210, %v209, 0.0
      %221 = vadd.xlane.f32.xlu0 %v220
      %v222 = vpop.xlane.xlu0 %221
      %v223 = vadd.f32 %v213, %v195
      %v224 = vadd.f32 %v216, %v196
      %v225 = vadd.f32 %v219, %v197
      %v226 = vadd.f32 %v222, %v198
      %v227 = vlaneseq
      %v228 = vshrl.u32 %v227, 7
      %v229 = vadd.s32 %v228, 8
      %v230 = vadd.s32 %v228, 16
      %v231 = vadd.s32 %v228, 24
      %vm232 = vcmask 7168
      %v233 = vsel %vm232, %v223, -inf
      %v234 = vsel %vm232, %v224, -inf
      %v235 = vsel %vm232, %v225, -inf
      %v236 = vsel %vm232, %v226, -inf
      %v237 = vmax.f32 %v233, %v234
      %v238 = vmax.f32 %v235, %v236
      %v239 = vmax.f32 %v237, %v238
      %240 = vmax.xlane.f32.xlu0 %v239
      %v241 = vpop.xlane.xlu0 %240
      %v242 = vrot.slane %v241, 4
      %v243 = vmax.f32 %v241, %v242
      %v244 = vrot.slane %v243, 2
      %v245 = vmax.f32 %v243, %v244
      %v246 = vrot.slane %v245, 1
      %v247 = vmax.f32 %v245, %v246
      %s248 = vtos %v247
      %v249 = vstv %s248
      %vm250 = vcmp.eq.f32.partialorder %v223, %v249
      %vm251 = vcmp.eq.f32.partialorder %v224, %v249
      %vm252 = vcmp.eq.f32.partialorder %v225, %v249
      %vm253 = vcmp.eq.f32.partialorder %v226, %v249
      %v254 = vsel %vm250, %v228, 32
      %v255 = vsel %vm251, %v229, 32
      %v256 = vsel %vm252, %v230, 32
      %v257 = vsel %vm253, %v231, 32
      %v258 = vsel %vm232, %v254, 2147483647
      %v259 = vsel %vm232, %v255, 2147483647
      %v260 = vsel %vm232, %v256, 2147483647
      %v261 = vsel %vm232, %v257, 2147483647
      %vm262 = vcmp.lt.s32.totalorder %v258, %v259
      %v263 = vsel %vm262, %v258, %v259
      %vm264 = vcmp.lt.s32.totalorder %v260, %v261
      %v265 = vsel %vm264, %v260, %v261
      %vm266 = vcmp.lt.s32.totalorder %v263, %v265
      %v267 = vsel %vm266, %v263, %v265
      %v268 = vand.u32 %v267, 65535
      %v269 = vshra.s32 %v267, 16
      %v270 = vcvt.s32.f32 %v268
      %v271 = vcvt.s32.f32 %v269
      %272 = vmin.xlane.f32.xlu0 %v271
      %v273 = vpop.xlane.xlu0 %272
      %vm274 = vcmp.eq.f32.partialorder %v271, %v273
      %v275 = vsel %vm274, %v270, inf
      %276 = vmin.xlane.f32.xlu0 %v275
      %v277 = vpop.xlane.xlu0 %276
      %v278 = vcvt.f32.s32 %v277
      %v279 = vcvt.f32.s32 %v273
      %v280 = vshll.u32 %v279, 16
      %v281 = vadd.s32 %v280, %v278
      %v282 = vrot.slane %v281, 4
      %vm283 = vcmp.lt.s32.totalorder %v281, %v282
      %v284 = vsel %vm283, %v281, %v282
      %v285 = vrot.slane %v284, 2
      %vm286 = vcmp.lt.s32.totalorder %v284, %v285
      %v287 = vsel %vm286, %v284, %v285
      %v288 = vrot.slane %v287, 1
      %vm289 = vcmp.lt.s32.totalorder %v287, %v288
      %v290 = vsel %vm289, %v287, %v288
      %s291 = vtos %v290
      %vm292 = vcmp.eq.s32.totalorder %v228, 0
      %v293 = vstv %s291
      %v294 = vsel %vm292, %v293, 0
      %v295 = vstv %s248
      %v296 = vtanh.pop %v295
      %s297 = vtos %v296
      %v298 = vstv %s297
      %v299 = vsel %vm292, %v298, 0.0
      %vm300 = vcmp.eq.s32.totalorder %v228, %v293
      %vm301 = vcmp.eq.s32.totalorder %v229, %v293
      %vm302 = vcmp.eq.s32.totalorder %v230, %v293
      %vm303 = vcmp.eq.s32.totalorder %v231, %v293
      %v304 = vsel %vm300, -inf, %v223
      %v305 = vsel %vm301, -inf, %v224
      %v306 = vsel %vm302, -inf, %v225
      %v307 = vsel %vm303, -inf, %v226
      %v308 = vsel %vm232, %v304, -inf
      %v309 = vsel %vm232, %v305, -inf
      %v310 = vsel %vm232, %v306, -inf
      %v311 = vsel %vm232, %v307, -inf
      %v312 = vmax.f32 %v308, %v309
      %v313 = vmax.f32 %v310, %v311
      %v314 = vmax.f32 %v312, %v313
      %315 = vmax.xlane.f32.xlu0 %v314
      %v316 = vpop.xlane.xlu0 %315
      %v317 = vrot.slane %v316, 4
      %v318 = vmax.f32 %v316, %v317
      %v319 = vrot.slane %v318, 2
      %v320 = vmax.f32 %v318, %v319
      %v321 = vrot.slane %v320, 1
      %v322 = vmax.f32 %v320, %v321
      %s323 = vtos %v322
      %v324 = vstv %s323
      %vm325 = vcmp.eq.f32.partialorder %v304, %v324
      %vm326 = vcmp.eq.f32.partialorder %v305, %v324
      %vm327 = vcmp.eq.f32.partialorder %v306, %v324
      %vm328 = vcmp.eq.f32.partialorder %v307, %v324
      %v329 = vsel %vm325, %v228, 32
      %v330 = vsel %vm326, %v229, 32
      %v331 = vsel %vm327, %v230, 32
      %v332 = vsel %vm328, %v231, 32
      %v333 = vsel %vm232, %v329, 2147483647
      %v334 = vsel %vm232, %v330, 2147483647
      %v335 = vsel %vm232, %v331, 2147483647
      %v336 = vsel %vm232, %v332, 2147483647
      %vm337 = vcmp.lt.s32.totalorder %v333, %v334
      %v338 = vsel %vm337, %v333, %v334
      %vm339 = vcmp.lt.s32.totalorder %v335, %v336
      %v340 = vsel %vm339, %v335, %v336
      %vm341 = vcmp.lt.s32.totalorder %v338, %v340
      %v342 = vsel %vm341, %v338, %v340
      %v343 = vand.u32 %v342, 65535
      %v344 = vshra.s32 %v342, 16
      %v345 = vcvt.s32.f32 %v343
      %v346 = vcvt.s32.f32 %v344
      %347 = vmin.xlane.f32.xlu0 %v346
      %v348 = vpop.xlane.xlu0 %347
      %vm349 = vcmp.eq.f32.partialorder %v346, %v348
      %v350 = vsel %vm349, %v345, inf
      %351 = vmin.xlane.f32.xlu0 %v350
      %v352 = vpop.xlane.xlu0 %351
      %v353 = vcvt.f32.s32 %v352
      %v354 = vcvt.f32.s32 %v348
      %v355 = vshll.u32 %v354, 16
      %v356 = vadd.s32 %v355, %v353
      %v357 = vrot.slane %v356, 4
      %vm358 = vcmp.lt.s32.totalorder %v356, %v357
      %v359 = vsel %vm358, %v356, %v357
      %v360 = vrot.slane %v359, 2
      %vm361 = vcmp.lt.s32.totalorder %v359, %v360
      %v362 = vsel %vm361, %v359, %v360
      %v363 = vrot.slane %v362, 1
      %vm364 = vcmp.lt.s32.totalorder %v362, %v363
      %v365 = vsel %vm364, %v362, %v363
      %s366 = vtos %v365
      %vm367 = vcmp.eq.s32.totalorder %v228, 1
      %v368 = vstv %s366
      %v369 = vsel %vm367, %v368, %v294
      %v370 = vstv %s323
      %v371 = vtanh.pop %v370
      %s372 = vtos %v371
      %v373 = vstv %s372
      %v374 = vsel %vm367, %v373, %v299
      %vm375 = vcmp.eq.s32.totalorder %v228, %v368
      %vm376 = vcmp.eq.s32.totalorder %v229, %v368
      %vm377 = vcmp.eq.s32.totalorder %v230, %v368
      %vm378 = vcmp.eq.s32.totalorder %v231, %v368
      %v379 = vsel %vm375, -inf, %v304
      %v380 = vsel %vm376, -inf, %v305
      %v381 = vsel %vm377, -inf, %v306
      %v382 = vsel %vm378, -inf, %v307
      %v383 = vsel %vm232, %v379, -inf
      %v384 = vsel %vm232, %v380, -inf
      %v385 = vsel %vm232, %v381, -inf
      %v386 = vsel %vm232, %v382, -inf
      %v387 = vmax.f32 %v383, %v384
      %v388 = vmax.f32 %v385, %v386
      %v389 = vmax.f32 %v387, %v388
      %390 = vmax.xlane.f32.xlu0 %v389
      %v391 = vpop.xlane.xlu0 %390
      %v392 = vrot.slane %v391, 4
      %v393 = vmax.f32 %v391, %v392
      %v394 = vrot.slane %v393, 2
      %v395 = vmax.f32 %v393, %v394
      %v396 = vrot.slane %v395, 1
      %v397 = vmax.f32 %v395, %v396
      %s398 = vtos %v397
      %v399 = vstv %s398
      %vm400 = vcmp.eq.f32.partialorder %v379, %v399
      %vm401 = vcmp.eq.f32.partialorder %v380, %v399
      %vm402 = vcmp.eq.f32.partialorder %v381, %v399
      %vm403 = vcmp.eq.f32.partialorder %v382, %v399
      %v404 = vsel %vm400, %v228, 32
      %v405 = vsel %vm401, %v229, 32
      %v406 = vsel %vm402, %v230, 32
      %v407 = vsel %vm403, %v231, 32
      %v408 = vsel %vm232, %v404, 2147483647
      %v409 = vsel %vm232, %v405, 2147483647
      %v410 = vsel %vm232, %v406, 2147483647
      %v411 = vsel %vm232, %v407, 2147483647
      %vm412 = vcmp.lt.s32.totalorder %v408, %v409
      %v413 = vsel %vm412, %v408, %v409
      %vm414 = vcmp.lt.s32.totalorder %v410, %v411
      %v415 = vsel %vm414, %v410, %v411
      %vm416 = vcmp.lt.s32.totalorder %v413, %v415
      %v417 = vsel %vm416, %v413, %v415
      %v418 = vand.u32 %v417, 65535
      %v419 = vshra.s32 %v417, 16
      %v420 = vcvt.s32.f32 %v418
      %v421 = vcvt.s32.f32 %v419
      %422 = vmin.xlane.f32.xlu0 %v421
      %v423 = vpop.xlane.xlu0 %422
      %vm424 = vcmp.eq.f32.partialorder %v421, %v423
      %v425 = vsel %vm424, %v420, inf
      %426 = vmin.xlane.f32.xlu0 %v425
      %v427 = vpop.xlane.xlu0 %426
      %v428 = vcvt.f32.s32 %v427
      %v429 = vcvt.f32.s32 %v423
      %v430 = vshll.u32 %v429, 16
      %v431 = vadd.s32 %v430, %v428
      %v432 = vrot.slane %v431, 4
      %vm433 = vcmp.lt.s32.totalorder %v431, %v432
      %v434 = vsel %vm433, %v431, %v432
      %v435 = vrot.slane %v434, 2
      %vm436 = vcmp.lt.s32.totalorder %v434, %v435
      %v437 = vsel %vm436, %v434, %v435
      %v438 = vrot.slane %v437, 1
      %vm439 = vcmp.lt.s32.totalorder %v437, %v438
      %v440 = vsel %vm439, %v437, %v438
      %s441 = vtos %v440
      %vm442 = vcmp.eq.s32.totalorder %v228, 2
      %v443 = vstv %s441
      %v444 = vsel %vm442, %v443, %v369
      %v445 = vstv %s398
      %v446 = vtanh.pop %v445
      %s447 = vtos %v446
      %v448 = vstv %s447
      %v449 = vsel %vm442, %v448, %v374
      %vm450 = vcmp.eq.s32.totalorder %v228, %v443
      %vm451 = vcmp.eq.s32.totalorder %v229, %v443
      %vm452 = vcmp.eq.s32.totalorder %v230, %v443
      %vm453 = vcmp.eq.s32.totalorder %v231, %v443
      %v454 = vsel %vm450, -inf, %v379
      %v455 = vsel %vm451, -inf, %v380
      %v456 = vsel %vm452, -inf, %v381
      %v457 = vsel %vm453, -inf, %v382
      %v458 = vsel %vm232, %v454, -inf
      %v459 = vsel %vm232, %v455, -inf
      %v460 = vsel %vm232, %v456, -inf
      %v461 = vsel %vm232, %v457, -inf
      %v462 = vmax.f32 %v458, %v459
      %v463 = vmax.f32 %v460, %v461
      %v464 = vmax.f32 %v462, %v463
      %465 = vmax.xlane.f32.xlu0 %v464
      %v466 = vpop.xlane.xlu0 %465
      %v467 = vrot.slane %v466, 4
      %v468 = vmax.f32 %v466, %v467
      %v469 = vrot.slane %v468, 2
      %v470 = vmax.f32 %v468, %v469
      %v471 = vrot.slane %v470, 1
      %v472 = vmax.f32 %v470, %v471
      %s473 = vtos %v472
      %v474 = vstv %s473
      %vm475 = vcmp.eq.f32.partialorder %v454, %v474
      %vm476 = vcmp.eq.f32.partialorder %v455, %v474
      %vm477 = vcmp.eq.f32.partialorder %v456, %v474
      %vm478 = vcmp.eq.f32.partialorder %v457, %v474
      %v479 = vsel %vm475, %v228, 32
      %v480 = vsel %vm476, %v229, 32
      %v481 = vsel %vm477, %v230, 32
      %v482 = vsel %vm478, %v231, 32
      %v483 = vsel %vm232, %v479, 2147483647
      %v484 = vsel %vm232, %v480, 2147483647
      %v485 = vsel %vm232, %v481, 2147483647
      %v486 = vsel %vm232, %v482, 2147483647
      %vm487 = vcmp.lt.s32.totalorder %v483, %v484
      %v488 = vsel %vm487, %v483, %v484
      %vm489 = vcmp.lt.s32.totalorder %v485, %v486
      %v490 = vsel %vm489, %v485, %v486
      %vm491 = vcmp.lt.s32.totalorder %v488, %v490
      %v492 = vsel %vm491, %v488, %v490
      %v493 = vand.u32 %v492, 65535
      %v494 = vshra.s32 %v492, 16
      %v495 = vcvt.s32.f32 %v493
      %v496 = vcvt.s32.f32 %v494
      %497 = vmin.xlane.f32.xlu0 %v496
      %v498 = vpop.xlane.xlu0 %497
      %vm499 = vcmp.eq.f32.partialorder %v496, %v498
      %v500 = vsel %vm499, %v495, inf
      %501 = vmin.xlane.f32.xlu0 %v500
      %v502 = vpop.xlane.xlu0 %501
      %v503 = vcvt.f32.s32 %v502
      %v504 = vcvt.f32.s32 %v498
      %v505 = vshll.u32 %v504, 16
      %v506 = vadd.s32 %v505, %v503
      %v507 = vrot.slane %v506, 4
      %vm508 = vcmp.lt.s32.totalorder %v506, %v507
      %v509 = vsel %vm508, %v506, %v507
      %v510 = vrot.slane %v509, 2
      %vm511 = vcmp.lt.s32.totalorder %v509, %v510
      %v512 = vsel %vm511, %v509, %v510
      %v513 = vrot.slane %v512, 1
      %vm514 = vcmp.lt.s32.totalorder %v512, %v513
      %v515 = vsel %vm514, %v512, %v513
      %s516 = vtos %v515
      %vm517 = vcmp.eq.s32.totalorder %v228, 3
      %v518 = vstv %s516
      %v519 = vsel %vm517, %v518, %v444
      %v520 = vstv %s473
      %v521 = vtanh.pop %v520
      %s522 = vtos %v521
      %v523 = vstv %s522
      %v524 = vsel %vm517, %v523, %v449
      %vm525 = vcmp.eq.s32.totalorder %v228, %v518
      %vm526 = vcmp.eq.s32.totalorder %v229, %v518
      %vm527 = vcmp.eq.s32.totalorder %v230, %v518
      %vm528 = vcmp.eq.s32.totalorder %v231, %v518
      %v529 = vsel %vm525, -inf, %v454
      %v530 = vsel %vm526, -inf, %v455
      %v531 = vsel %vm527, -inf, %v456
      %v532 = vsel %vm528, -inf, %v457
      %v533 = vsel %vm232, %v529, -inf
      %v534 = vsel %vm232, %v530, -inf
      %v535 = vsel %vm232, %v531, -inf
      %v536 = vsel %vm232, %v532, -inf
      %v537 = vmax.f32 %v533, %v534
      %v538 = vmax.f32 %v535, %v536
      %v539 = vmax.f32 %v537, %v538
      %540 = vmax.xlane.f32.xlu0 %v539
      %v541 = vpop.xlane.xlu0 %540
      %v542 = vrot.slane %v541, 4
      %v543 = vmax.f32 %v541, %v542
      %v544 = vrot.slane %v543, 2
      %v545 = vmax.f32 %v543, %v544
      %v546 = vrot.slane %v545, 1
      %v547 = vmax.f32 %v545, %v546
      %s548 = vtos %v547
      %v549 = vstv %s548
      %vm550 = vcmp.eq.f32.partialorder %v529, %v549
      %vm551 = vcmp.eq.f32.partialorder %v530, %v549
      %vm552 = vcmp.eq.f32.partialorder %v531, %v549
      %vm553 = vcmp.eq.f32.partialorder %v532, %v549
      %v554 = vsel %vm550, %v228, 32
      %v555 = vsel %vm551, %v229, 32
      %v556 = vsel %vm552, %v230, 32
      %v557 = vsel %vm553, %v231, 32
      %v558 = vsel %vm232, %v554, 2147483647
      %v559 = vsel %vm232, %v555, 2147483647
      %v560 = vsel %vm232, %v556, 2147483647
      %v561 = vsel %vm232, %v557, 2147483647
      %vm562 = vcmp.lt.s32.totalorder %v558, %v559
      %v563 = vsel %vm562, %v558, %v559
      %vm564 = vcmp.lt.s32.totalorder %v560, %v561
      %v565 = vsel %vm564, %v560, %v561
      %vm566 = vcmp.lt.s32.totalorder %v563, %v565
      %v567 = vsel %vm566, %v563, %v565
      %v568 = vand.u32 %v567, 65535
      %v569 = vshra.s32 %v567, 16
      %v570 = vcvt.s32.f32 %v568
      %v571 = vcvt.s32.f32 %v569
      %572 = vmin.xlane.f32.xlu0 %v571
      %v573 = vpop.xlane.xlu0 %572
      %vm574 = vcmp.eq.f32.partialorder %v571, %v573
      %v575 = vsel %vm574, %v570, inf
      %576 = vmin.xlane.f32.xlu0 %v575
      %v577 = vpop.xlane.xlu0 %576
      %v578 = vcvt.f32.s32 %v577
      %v579 = vcvt.f32.s32 %v573
      %v580 = vshll.u32 %v579, 16
      %v581 = vadd.s32 %v580, %v578
      %v582 = vrot.slane %v581, 4
      %vm583 = vcmp.lt.s32.totalorder %v581, %v582
      %v584 = vsel %vm583, %v581, %v582
      %v585 = vrot.slane %v584, 2
      %vm586 = vcmp.lt.s32.totalorder %v584, %v585
      %v587 = vsel %vm586, %v584, %v585
      %v588 = vrot.slane %v587, 1
      %vm589 = vcmp.lt.s32.totalorder %v587, %v588
      %v590 = vsel %vm589, %v587, %v588
      %s591 = vtos %v590
      %vm592 = vcmp.eq.s32.totalorder %v228, 4
      %v593 = vstv %s591
      %v594 = vsel %vm592, %v593, %v519
      %v595 = vstv %s548
      %v596 = vtanh.pop %v595
      %s597 = vtos %v596
      %v598 = vstv %s597
      %v599 = vsel %vm592, %v598, %v524
      %vm600 = vcmp.eq.s32.totalorder %v228, %v593
      %vm601 = vcmp.eq.s32.totalorder %v229, %v593
      %vm602 = vcmp.eq.s32.totalorder %v230, %v593
      %vm603 = vcmp.eq.s32.totalorder %v231, %v593
      %v604 = vsel %vm600, -inf, %v529
      %v605 = vsel %vm601, -inf, %v530
      %v606 = vsel %vm602, -inf, %v531
      %v607 = vsel %vm603, -inf, %v532
      %v608 = vsel %vm232, %v604, -inf
      %v609 = vsel %vm232, %v605, -inf
      %v610 = vsel %vm232, %v606, -inf
      %v611 = vsel %vm232, %v607, -inf
      %v612 = vmax.f32 %v608, %v609
      %v613 = vmax.f32 %v610, %v611
      %v614 = vmax.f32 %v612, %v613
      %615 = vmax.xlane.f32.xlu0 %v614
      %v616 = vpop.xlane.xlu0 %615
      %v617 = vrot.slane %v616, 4
      %v618 = vmax.f32 %v616, %v617
      %v619 = vrot.slane %v618, 2
      %v620 = vmax.f32 %v618, %v619
      %v621 = vrot.slane %v620, 1
      %v622 = vmax.f32 %v620, %v621
      %s623 = vtos %v622
      %v624 = vstv %s623
      %vm625 = vcmp.eq.f32.partialorder %v604, %v624
      %vm626 = vcmp.eq.f32.partialorder %v605, %v624
      %vm627 = vcmp.eq.f32.partialorder %v606, %v624
      %vm628 = vcmp.eq.f32.partialorder %v607, %v624
      %v629 = vsel %vm625, %v228, 32
      %v630 = vsel %vm626, %v229, 32
      %v631 = vsel %vm627, %v230, 32
      %v632 = vsel %vm628, %v231, 32
      %v633 = vsel %vm232, %v629, 2147483647
      %v634 = vsel %vm232, %v630, 2147483647
      %v635 = vsel %vm232, %v631, 2147483647
      %v636 = vsel %vm232, %v632, 2147483647
      %vm637 = vcmp.lt.s32.totalorder %v633, %v634
      %v638 = vsel %vm637, %v633, %v634
      %vm639 = vcmp.lt.s32.totalorder %v635, %v636
      %v640 = vsel %vm639, %v635, %v636
      %vm641 = vcmp.lt.s32.totalorder %v638, %v640
      %v642 = vsel %vm641, %v638, %v640
      %v643 = vand.u32 %v642, 65535
      %v644 = vshra.s32 %v642, 16
      %v645 = vcvt.s32.f32 %v643
      %v646 = vcvt.s32.f32 %v644
      %647 = vmin.xlane.f32.xlu0 %v646
      %v648 = vpop.xlane.xlu0 %647
      %vm649 = vcmp.eq.f32.partialorder %v646, %v648
      %v650 = vsel %vm649, %v645, inf
      %651 = vmin.xlane.f32.xlu0 %v650
      %v652 = vpop.xlane.xlu0 %651
      %v653 = vcvt.f32.s32 %v652
      %v654 = vcvt.f32.s32 %v648
      %v655 = vshll.u32 %v654, 16
      %v656 = vadd.s32 %v655, %v653
      %v657 = vrot.slane %v656, 4
      %vm658 = vcmp.lt.s32.totalorder %v656, %v657
      %v659 = vsel %vm658, %v656, %v657
      %v660 = vrot.slane %v659, 2
      %vm661 = vcmp.lt.s32.totalorder %v659, %v660
      %v662 = vsel %vm661, %v659, %v660
      %v663 = vrot.slane %v662, 1
      %vm664 = vcmp.lt.s32.totalorder %v662, %v663
      %v665 = vsel %vm664, %v662, %v663
      %s666 = vtos %v665
      %vm667 = vcmp.eq.s32.totalorder %v228, 5
      %v668 = vstv %s666
      %v669 = vsel %vm667, %v668, %v594
      %v670 = vstv %s623
      %v671 = vtanh.pop %v670
      %s672 = vtos %v671
      %v673 = vstv %s672
      %v674 = vsel %vm667, %v673, %v599
      %vm675 = vcmp.eq.s32.totalorder %v228, %v668
      %vm676 = vcmp.eq.s32.totalorder %v229, %v668
      %vm677 = vcmp.eq.s32.totalorder %v230, %v668
      %vm678 = vcmp.eq.s32.totalorder %v231, %v668
      %v679 = vsel %vm675, -inf, %v604
      %v680 = vsel %vm676, -inf, %v605
      %v681 = vsel %vm677, -inf, %v606
      %v682 = vsel %vm678, -inf, %v607
      %v683 = vsel %vm232, %v679, -inf
      %v684 = vsel %vm232, %v680, -inf
      %v685 = vsel %vm232, %v681, -inf
      %v686 = vsel %vm232, %v682, -inf
      %v687 = vmax.f32 %v683, %v684
      %v688 = vmax.f32 %v685, %v686
      %v689 = vmax.f32 %v687, %v688
      %690 = vmax.xlane.f32.xlu0 %v689
      %v691 = vpop.xlane.xlu0 %690
      %v692 = vrot.slane %v691, 4
      %v693 = vmax.f32 %v691, %v692
      %v694 = vrot.slane %v693, 2
      %v695 = vmax.f32 %v693, %v694
      %v696 = vrot.slane %v695, 1
      %v697 = vmax.f32 %v695, %v696
      %s698 = vtos %v697
      %v699 = vstv %s698
      %vm700 = vcmp.eq.f32.partialorder %v679, %v699
      %vm701 = vcmp.eq.f32.partialorder %v680, %v699
      %vm702 = vcmp.eq.f32.partialorder %v681, %v699
      %vm703 = vcmp.eq.f32.partialorder %v682, %v699
      %v704 = vsel %vm700, %v228, 32
      %v705 = vsel %vm701, %v229, 32
      %v706 = vsel %vm702, %v230, 32
      %v707 = vsel %vm703, %v231, 32
      %v708 = vsel %vm232, %v704, 2147483647
      %v709 = vsel %vm232, %v705, 2147483647
      %v710 = vsel %vm232, %v706, 2147483647
      %v711 = vsel %vm232, %v707, 2147483647
      %vm712 = vcmp.lt.s32.totalorder %v708, %v709
      %v713 = vsel %vm712, %v708, %v709
      %vm714 = vcmp.lt.s32.totalorder %v710, %v711
      %v715 = vsel %vm714, %v710, %v711
      %vm716 = vcmp.lt.s32.totalorder %v713, %v715
      %v717 = vsel %vm716, %v713, %v715
      %v718 = vand.u32 %v717, 65535
      %v719 = vshra.s32 %v717, 16
      %v720 = vcvt.s32.f32 %v718
      %v721 = vcvt.s32.f32 %v719
      %722 = vmin.xlane.f32.xlu0 %v721
      %v723 = vpop.xlane.xlu0 %722
      %vm724 = vcmp.eq.f32.partialorder %v721, %v723
      %v725 = vsel %vm724, %v720, inf
      %726 = vmin.xlane.f32.xlu0 %v725
      %v727 = vpop.xlane.xlu0 %726
      %v728 = vcvt.f32.s32 %v727
      %v729 = vcvt.f32.s32 %v723
      %v730 = vshll.u32 %v729, 16
      %v731 = vadd.s32 %v730, %v728
      %v732 = vrot.slane %v731, 4
      %vm733 = vcmp.lt.s32.totalorder %v731, %v732
      %v734 = vsel %vm733, %v731, %v732
      %v735 = vrot.slane %v734, 2
      %vm736 = vcmp.lt.s32.totalorder %v734, %v735
      %v737 = vsel %vm736, %v734, %v735
      %v738 = vrot.slane %v737, 1
      %vm739 = vcmp.lt.s32.totalorder %v737, %v738
      %v740 = vsel %vm739, %v737, %v738
      %s741 = vtos %v740
      %vm742 = vcmp.eq.s32.totalorder %v228, 6
      %v743 = vstv %s741
      %v744 = vsel %vm742, %v743, %v669
      %v745 = vstv %s698
      %v746 = vtanh.pop %v745
      %s747 = vtos %v746
      %v748 = vstv %s747
      %v749 = vsel %vm742, %v748, %v674
      %vm750 = vcmp.eq.s32.totalorder %v228, %v743
      %vm751 = vcmp.eq.s32.totalorder %v229, %v743
      %vm752 = vcmp.eq.s32.totalorder %v230, %v743
      %vm753 = vcmp.eq.s32.totalorder %v231, %v743
      %v754 = vsel %vm750, -inf, %v679
      %v755 = vsel %vm751, -inf, %v680
      %v756 = vsel %vm752, -inf, %v681
      %v757 = vsel %vm753, -inf, %v682
      %v758 = vsel %vm232, %v754, -inf
      %v759 = vsel %vm232, %v755, -inf
      %v760 = vsel %vm232, %v756, -inf
      %v761 = vsel %vm232, %v757, -inf
      %v762 = vmax.f32 %v758, %v759
      %v763 = vmax.f32 %v760, %v761
      %v764 = vmax.f32 %v762, %v763
      %765 = vmax.xlane.f32.xlu0 %v764
      %v766 = vpop.xlane.xlu0 %765
      %v767 = vrot.slane %v766, 4
      %v768 = vmax.f32 %v766, %v767
      %v769 = vrot.slane %v768, 2
      %v770 = vmax.f32 %v768, %v769
      %v771 = vrot.slane %v770, 1
      %v772 = vmax.f32 %v770, %v771
      %s773 = vtos %v772
      %v774 = vstv %s773
      %vm775 = vcmp.eq.f32.partialorder %v754, %v774
      %vm776 = vcmp.eq.f32.partialorder %v755, %v774
      %vm777 = vcmp.eq.f32.partialorder %v756, %v774
      %vm778 = vcmp.eq.f32.partialorder %v757, %v774
      %v779 = vsel %vm775, %v228, 32
      %v780 = vsel %vm776, %v229, 32
      %v781 = vsel %vm777, %v230, 32
      %v782 = vsel %vm778, %v231, 32
      %v783 = vsel %vm232, %v779, 2147483647
      %v784 = vsel %vm232, %v780, 2147483647
      %v785 = vsel %vm232, %v781, 2147483647
      %v786 = vsel %vm232, %v782, 2147483647
      %vm787 = vcmp.lt.s32.totalorder %v783, %v784
      %v788 = vsel %vm787, %v783, %v784
      %vm789 = vcmp.lt.s32.totalorder %v785, %v786
      %v790 = vsel %vm789, %v785, %v786
      %vm791 = vcmp.lt.s32.totalorder %v788, %v790
      %v792 = vsel %vm791, %v788, %v790
      %v793 = vand.u32 %v792, 65535
      %v794 = vshra.s32 %v792, 16
      %v795 = vcvt.s32.f32 %v793
      %v796 = vcvt.s32.f32 %v794
      %797 = vmin.xlane.f32.xlu0 %v796
      %v798 = vpop.xlane.xlu0 %797
      %vm799 = vcmp.eq.f32.partialorder %v796, %v798
      %v800 = vsel %vm799, %v795, inf
      %801 = vmin.xlane.f32.xlu0 %v800
      %v802 = vpop.xlane.xlu0 %801
      %v803 = vcvt.f32.s32 %v802
      %v804 = vcvt.f32.s32 %v798
      %v805 = vshll.u32 %v804, 16
      %v806 = vadd.s32 %v805, %v803
      %v807 = vrot.slane %v806, 4
      %vm808 = vcmp.lt.s32.totalorder %v806, %v807
      %v809 = vsel %vm808, %v806, %v807
      %v810 = vrot.slane %v809, 2
      %vm811 = vcmp.lt.s32.totalorder %v809, %v810
      %v812 = vsel %vm811, %v809, %v810
      %v813 = vrot.slane %v812, 1
      %vm814 = vcmp.lt.s32.totalorder %v812, %v813
      %v815 = vsel %vm814, %v812, %v813
      %s816 = vtos %v815
      %vm817 = vcmp.eq.s32.totalorder %v228, 7
      %v818 = vstv %s816
      %v819 = vsel %vm817, %v818, %v744
      %v820 = vstv %s773
      %v821 = vtanh.pop %v820
      %s822 = vtos %v821
      %v823 = vstv %s822
      %v824 = vsel %vm817, %v823, %v749
      %v825 = vlaneseq
      %v826 = vand.u32 %v825, 127
      %vm827 = vcmp.eq.s32.totalorder %v819, %v826
      %v828 = vsel %vm827, %v824, 0.0
      %vm829 = vcmask 261120
      %v831 = vsel %vm829, %v828, 0
      %833 = vmatprep.subr.mxu0 0.0
      %834 = vmatpush1.msra.mxu0 %v191
      %835 = vmatprep.subr.mxu0 0.0
      %836 = vmatpush1.msra.mxu0 %v192
      %837 = vmatprep.subr.mxu0 0.0
      %838 = vmatpush1.msra.mxu0 %v193
      %839 = vmatprep.subr.mxu0 0.0
      %840 = vmatpush1.msra.mxu0 %v194
      %841 = vmatprep.subr.mxu0 0.0
      %842 = vmatpush1.msra.mxu0 0.0
      %843 = vmatprep.subr.mxu0 0.0
      %844 = vmatpush1.msra.mxu0 0.0
      %845 = vmatprep.subr.mxu0 0.0
      %846 = vmatpush1.msra.mxu0 0.0
      %847 = vmatprep.subr.mxu0 0.0
      %848 = vmatpush1.msra.mxu0 0.0
      %849 = vmatprep.subr.mxu0 0.0
      %850 = vmatpush1.msra.mxu0 0.0
      %851 = vmatprep.subr.mxu0 0.0
      %852 = vmatpush1.msra.mxu0 0.0
      %853 = vmatprep.subr.mxu0 0.0
      %854 = vmatpush1.msra.mxu0 0.0
      %855 = vmatprep.subr.mxu0 0.0
      %856 = vmatpush1.msra.mxu0 0.0
      %857 = vmatprep.subr.mxu0 0.0
      %858 = vmatpush1.msra.mxu0 0.0
      %859 = vmatprep.subr.mxu0 0.0
      %860 = vmatpush1.msra.mxu0 0.0
      %861 = vmatprep.subr.mxu0 0.0
      %862 = vmatpush1.msra.mxu0 0.0
      %863 = vmatprep.subr.mxu0 0.0
      %864 = vmatpush1.msra.mxu0 0.0
      %865 = vmatprep.subr.mxu0 0.0
      %866 = vmatpush1.msra.mxu0 0.0
      %867 = vmatprep.subr.mxu0 0.0
      %868 = vmatpush1.msra.mxu0 0.0
      %869 = vmatprep.subr.mxu0 0.0
      %870 = vmatpush1.msra.mxu0 0.0
      %871 = vmatprep.subr.mxu0 0.0
      %872 = vmatpush1.msra.mxu0 0.0
      %873 = vmatprep.subr.mxu0 0.0
      %874 = vmatpush1.msra.mxu0 0.0
      %875 = vmatprep.subr.mxu0 0.0
      %876 = vmatpush1.msra.mxu0 0.0
      %877 = vmatprep.subr.mxu0 0.0
      %878 = vmatpush1.msra.mxu0 0.0
      %879 = vmatprep.subr.mxu0 0.0
      %880 = vmatpush1.msra.mxu0 0.0
      %881 = vmatprep.subr.mxu0 0.0
      %882 = vmatpush1.msra.mxu0 0.0
      %883 = vmatprep.subr.mxu0 0.0
      %884 = vmatpush1.msra.mxu0 0.0
      %885 = vmatprep.subr.mxu0 0.0
      %886 = vmatpush1.msra.mxu0 0.0
      %887 = vmatprep.subr.mxu0 0.0
      %888 = vmatpush1.msra.mxu0 0.0
      %889 = vmatprep.subr.mxu0 0.0
      %890 = vmatpush1.msra.mxu0 0.0
      %891 = vmatprep.subr.mxu0 0.0
      %892 = vmatpush1.msra.mxu0 0.0
      %893 = vmatprep.subr.mxu0 0.0
      %894 = vmatpush1.msra.mxu0 0.0
      %895 = vmatprep.subr.mxu0 0.0
      %896 = vmatpush1.msra.mxu0 0.0
      %897 = vmatprep.mubr.f32.mxu0 0.0
      %898 = vmatmul.mubr.f32.gmra.mrb[0].mxu0 %v831
      %v899 = vpop.f32.mrb[0].mxu0
      %v900 = vadd.f32 0.0, %v899
      %v901 = vpop.f32.mrb[0].mxu0
      %902 = vdwg.mxu0
      %903 = vxpose.xlu0.b32.start [1/16] %v900, 128
      %904 = vxpose.xlu0.b32.cont [2/16] 0.0, 128
      %905 = vxpose.xlu0.b32.cont [3/16] 0.0, 128
      %906 = vxpose.xlu0.b32.cont [4/16] 0.0, 128
      %907 = vxpose.xlu0.b32.cont [5/16] 0.0, 128
      %908 = vxpose.xlu0.b32.cont [6/16] 0.0, 128
      %909 = vxpose.xlu0.b32.cont [7/16] 0.0, 128
      %910 = vxpose.xlu0.b32.cont [8/16] 0.0, 128
      %911 = vxpose.xlu0.b32.cont [9/16] 0.0, 128
      %912 = vxpose.xlu0.b32.cont [10/16] 0.0, 128
      %913 = vxpose.xlu0.b32.cont [11/16] 0.0, 128
      %914 = vxpose.xlu0.b32.cont [12/16] 0.0, 128
      %915 = vxpose.xlu0.b32.cont [13/16] 0.0, 128
      %916 = vxpose.xlu0.b32.cont [14/16] 0.0, 128
      %917 = vxpose.xlu0.b32.cont [15/16] 0.0, 128
      %918 = vxpose.xlu0.b32.end [16/16] 0.0, 128
      %v919 = vpop.trf.xlu0
      %v920 = vpop.trf.xlu0
      %v921 = vpop.trf.xlu0
      %v922 = vpop.trf.xlu0
      %v923 = vpop.trf.xlu0
      %v924 = vpop.trf.xlu0
      %v925 = vpop.trf.xlu0
      %v926 = vpop.trf.xlu0
      %v927 = vpop.trf.xlu0
      %v928 = vpop.trf.xlu0
      %v929 = vpop.trf.xlu0
      %v930 = vpop.trf.xlu0
      %v931 = vpop.trf.xlu0
      %v932 = vpop.trf.xlu0
      %v933 = vpop.trf.xlu0
      %v934 = vpop.trf.xlu0
      %vm935 = vcmask 64512
      %936 = vst.msk [vmem:[%s190] sm:$0xff] %vm935, %v919
      %937 = vst.msk [vmem:[%s190 + $0x8] sm:$0xff] %vm935, %v920
      %p938 = scmp.lt.s32.totalorder %s14, 3
      %s939 = scalar_select %p938, %s14, 3
      %s940 = smul.addr %s939, 2
      %s941 = smul.addr %s940, 8
      %s942 = scalar_lea.vmem %s3, %s941
      // Predicated region
      $region33: #{_grcu_forward_impl.4} parent=31 // pred_check
        %p943 = pneg %p105
      $region34: #{_grcu_forward_impl.4} parent=31 // pred_check_branch
        %945 = sbr.rel (%p943) target = $region36
      $region35: #{_grcu_forward_impl.4} parent=31 // pred_region
        _
      $region36: #{_grcu_forward_impl.4} parent=31 // pred_fallthru
        _
    $region32: #{_grcu_forward_impl.4} parent=5 // pred_fallthru
      _
    %p946 = scmp.le.s32.totalorder 2, %s9
    // Predicated region
    $region37: #{_grcu_forward_impl.4} parent=5 // pred_check
      %p947 = pneg %p946
    $region38: #{_grcu_forward_impl.4} parent=5 // pred_check_branch
      %949 = sbr.rel (%p947) target = $region40
    $region39: #{_grcu_forward_impl.4} parent=5 // pred_region
      %s950 = ssub.s32 %s9, 2
      // Predicated region
      $region41: #{_grcu_forward_impl.4} parent=39 // pred_check
        %p951 = pneg %p111
      $region42: #{_grcu_forward_impl.4} parent=39 // pred_check_branch
        %953 = sbr.rel (%p951) target = $region44
      $region43: #{_grcu_forward_impl.4} parent=39 // pred_region
        %p954 = scmp.lt.s32.totalorder %s15, 3
        %s955 = scalar_select %p954, %s15, 3
        %s956 = smul.addr %s955, 2
        %s957 = smul.addr %s956, 8
        %s958 = scalar_lea.vmem %s3, %s957
      $region44: #{_grcu_forward_impl.4} parent=39 // pred_fallthru
        _
    $region40: #{_grcu_forward_impl.4} parent=5 // pred_fallthru
      _
  $region6: #{_grcu_forward_impl.4} parent=0 // loop_footer
    %s13 = sadd.s32 1, %s9
  $region7: #{_grcu_forward_impl.4} parent=0 // loop_footer_branch
    %8 = sbr.rel target = $region3
  $region8: #{_grcu_forward_impl.4} parent=0 // loop_exit
    _

</llo_original>
